<compile_context>
chip_gen: v7x
topology: tpu7x:2x2x1
jax: 0.10.0
libtpu: 0.0.40
codegen_flags: <defaults>
</compile_context>

<pallas_src>
import math
from math import ceil
from warnings import warn

import numpy as np

import jax
import jax.numpy as jnp
from jax import lax
from jax.experimental import pallas as pl
from jax.experimental.pallas import tpu as pltpu


# ----------------------------- glue helpers (plain Python / JAX) -------------

def _pair(v):
    if isinstance(v, (tuple, list)):
        return tuple(v)
    return (v, v)


def _check_patch_fit(original_size, window_size, stride):
    rv = (original_size[0] - window_size[0]) % stride[0]
    rh = (original_size[1] - window_size[1]) % stride[1]
    return rv == 0 and rh == 0


def compute_padding(original_size, window_size, stride=None):
    original_size = _pair(original_size)
    window_size = _pair(window_size)
    stride = _pair(window_size if stride is None else stride)
    rv = (original_size[0] - window_size[0]) % stride[0]
    rh = (original_size[1] - window_size[1]) % stride[1]
    vp = stride[0] - rv if rv != 0 else 0
    hp = stride[1] - rh if rh != 0 else 0
    if vp % 2 == 0:
        top = bottom = vp // 2
    else:
        top, bottom = vp // 2, ceil(vp / 2)
    if hp % 2 == 0:
        left = right = hp // 2
    else:
        left, right = hp // 2, ceil(hp / 2)
    return (int(top), int(bottom), int(left), int(right))


def create_padding_tuple(padding):
    padding = _pair(padding)
    assert len(padding) in (2, 4), "padding must be int, 2-tuple or 4-tuple"
    if len(padding) == 2:
        pad_vert = _pair(padding[0])
        pad_horz = _pair(padding[1])
    else:
        pad_vert = tuple(padding[:2])
        pad_horz = tuple(padding[2:])
    # (left, right, top, bottom) -- same ordering torch.nn.functional.pad uses.
    return tuple(pad_horz) + tuple(pad_vert)


def _vmem_capacity_bytes(default=128 << 20):
    try:
        info = pltpu.get_tpu_info()
        cap = getattr(info, "vmem_capacity_bytes", None)
        if cap:
            return int(cap)
    except Exception:
        pass
    return default


# ----------------------------- Pallas kernel ---------------------------------

def _make_kernel(*, C, wh, ww, sh, sw, n_w, n_h, rows_per_step, strip_mode,
                 use_mxu, windows_per_chunk):
    """Build the kernel body.

    x_ref : (1, C, strip_h, Wp)   strip-tiled (sh >= wh)  OR
            (1, C, Hp,      Wp)   whole padded image (overlapping H).
    sel_ref (optional, bf16 overlapping-W only): (Wp, n_w*ww) one-hot matrix.
    o_ref : (1, rows_per_step, C*wh, n_w*ww)   sublane- & lane-dense slabs.
    """
    n_cols = n_w * ww

    def body(x_ref, sel_ref, o_ref):
        blk = pl.program_id(1)
        wp = x_ref.shape[-1]

        def emit_row(r):
            if strip_mode:
                # Offsets are relative to the DMA'd strip; clamp inside the
                # block for the padded tail rows (sliced off in the wrapper).
                local_row = jnp.minimum(r, n_h - 1 - blk * rows_per_step)
                h0 = pl.multiple_of(local_row * sh, sh)
            else:
                grow = jnp.minimum(blk * rows_per_step + r, n_h - 1)
                h0 = pl.multiple_of(grow * sh, sh)
            strip = x_ref[0, :, pl.ds(h0, wh), :]          # (C, wh, Wp)
            strip2 = strip.reshape(C * wh, wp)             # sublane-dense
            if sw == ww:
                # Non-overlapping in W: the slab is a pure prefix copy.
                o_ref[0, r] = strip2[:, :n_cols]
            elif use_mxu:
                # Exact one-hot selection matmul on the (idle) MXU.  bf16 * 1.0
                # accumulated in f32 is exact, so the cast back is lossless.
                slab = jnp.dot(strip2, sel_ref[...],
                               preferred_element_type=jnp.float32)
                o_ref[0, r] = slab.astype(o_ref.dtype)
            else:
                # Chunked lane gather: bound live vregs / static code per chunk.
                for j0 in range(0, n_w, windows_per_chunk):
                    j1 = min(j0 + windows_per_chunk, n_w)
                    chunk = jnp.concatenate(
                        [strip2[:, j * sw:j * sw + ww] for j in range(j0, j1)],
                        axis=-1)
                    o_ref[0, r, :, j0 * ww:j1 * ww] = chunk

        if rows_per_step <= 8:
            for r in range(rows_per_step):                 # short static unroll
                emit_row(r)
        else:
            def loop_body(r, carry):
                emit_row(r)
                return carry
            lax.fori_loop(0, rows_per_step, loop_body, 0)  # bounded code size

    if use_mxu:
        def kernel(x_ref, sel_ref, o_ref):
            body(x_ref, sel_ref, o_ref)
    else:
        def kernel(x_ref, o_ref):
            body(x_ref, None, o_ref)
    return kernel


def extract_tensor_patches(x, window_size, stride=1, padding=0,
                           allow_auto_padding=False):
    if x.ndim != 4:
        raise ValueError(f"Invalid input shape, we expect BxCxHxW. Got: {x.shape}")
    wh, ww = _pair(window_size)
    sh, sw = _pair(stride)
    H, W = int(x.shape[-2]), int(x.shape[-1])

    if not padding:
        if not _check_patch_fit((H, W), (wh, ww), (sh, sw)):
            if not allow_auto_padding:
                warn("The window will not fit into the image; final incomplete "
                     "patches will be dropped (enable allow_auto_padding to pad).",
                     stacklevel=1)
            else:
                padding = compute_padding((H, W), (wh, ww), (sh, sw))

    if padding:
        left, right, top, bottom = create_padding_tuple(padding)
        x = jnp.pad(x, ((0, 0), (0, 0), (top, bottom), (left, right)))

    B, C, Hp, Wp = (int(s) for s in x.shape)
    n_h = (Hp - wh) // sh + 1
    n_w = (Wp - ww) // sw + 1
    if n_h <= 0 or n_w <= 0:
        raise ValueError(
            f"Window {(wh, ww)} does not fit into the (padded) image {(Hp, Wp)}.")

    itemsize = jnp.dtype(x.dtype).itemsize
    n_cols = n_w * ww
    slab_bytes = C * wh * n_cols * itemsize

    use_mxu = (sw != ww) and x.dtype == jnp.bfloat16
    sel_bytes = Wp * n_cols * itemsize if use_mxu else 0

    # ---- VMEM plan (chip-aware: 64 MiB v7x vs 128 MiB v5e/v6e) --------------
    vmem_cap = _vmem_capacity_bytes()
    budget = int(0.9 * vmem_cap)
    target_out_block = (3 << 20) if vmem_cap >= (96 << 20) else (3 << 19)
    rows_target = max(1, min(n_h, target_out_block // max(slab_bytes, 1)))

    def _need(rows, strip):
        in_block = C * (rows * sh if strip else Hp) * Wp * itemsize
        return 2 * in_block + 2 * rows * slab_bytes + 2 * sel_bytes + (4 << 20)

    strip_mode = False
    rows_per_step = rows_target
    strip_h = Hp
    if sh >= wh:
        # Strip-tiled input: strip covers rows_per_step*sh rows (multiple of 8
        # so the sublane-tiled block shape is legal and loads stay aligned).
        step = 8 // math.gcd(sh, 8)
        rows = max(step, (rows_target // step) * step)
        while rows > step and (rows * sh > Hp or _need(rows, True) > budget):
            rows -= step
        if rows * sh <= Hp:
            strip_mode = True
            rows_per_step = rows
            strip_h = rows * sh
    if not strip_mode:
        while rows_per_step > 1 and _need(rows_per_step, False) > budget:
            rows_per_step = max(1, rows_per_step // 2)
        strip_h = Hp
        # TODO(synk): overlapping-H (sh < wh) images whose resident copy alone
        # exceeds VMEM need a manual row-strip DMA (memory_space=pl.ANY +
        # pltpu.make_async_copy); the resident path below covers moderate sizes.

    n_blocks = pl.cdiv(n_h, rows_per_step)
    n_h_pad = n_blocks * rows_per_step

    # Chunk size for the lane-gather path: keep live vregs bounded (~32 vregs).
    sub_tiles = -(-(C * wh) // 8)
    windows_per_chunk = max(1, min(n_w, (max(1, 32 // sub_tiles) * 128) // max(ww, 1)))

    kernel = _make_kernel(C=C, wh=wh, ww=ww, sh=sh, sw=sw, n_w=n_w, n_h=n_h,
                          rows_per_step=rows_per_step, strip_mode=strip_mode,
                          use_mxu=use_mxu, windows_per_chunk=windows_per_chunk)

    vmem_limit = int(min(max(_need(rows_per_step, strip_mode), 32 << 20), budget))
    flops = 2 * B * n_h_pad * (C * wh) * Wp * n_cols if use_mxu else 0
    bytes_accessed = (B * C * Hp * Wp + B * n_h_pad * C * wh * n_cols) * itemsize

    # Strip mode: row blocks are independent and read disjoint input strips, so
    # both axes shard across TensorCores.  Resident mode: keep the row axis
    # "arbitrary" so the whole-image input DMA is not duplicated per core.
    dims = ("parallel", "parallel") if strip_mode else ("parallel", "arbitrary")

    if use_mxu:
        sel_np = np.zeros((Wp, n_cols), dtype=np.float32)
        for j in range(n_w):
            for c in range(ww):
                sel_np[j * sw + c, j * ww + c] = 1.0
        sel = jnp.asarray(sel_np, dtype=x.dtype)
        operands = (x, sel)
    else:
        operands = (x,)

    def run(input_pipeline_mode):
        if strip_mode:
            x_spec = pl.BlockSpec((1, C, strip_h, Wp), lambda b, i: (b, 0, i, 0))
        else:
            kw = {}
            if input_pipeline_mode is not None:
                kw["pipeline_mode"] = input_pipeline_mode
            x_spec = pl.BlockSpec((1, C, Hp, Wp), lambda b, i: (b, 0, 0, 0), **kw)
        in_specs = [x_spec]
        if use_mxu:
            in_specs.append(pl.BlockSpec((Wp, n_cols), lambda b, i: (0, 0)))
        return pl.pallas_call(
            kernel,
            out_shape=jax.ShapeDtypeStruct((B, n_h_pad, C * wh, n_cols), x.dtype),
            grid_spec=pltpu.PrefetchScalarGridSpec(
                num_scalar_prefetch=0,
                grid=(B, n_blocks),
                in_specs=in_specs,
                out_specs=pl.BlockSpec((1, rows_per_step, C * wh, n_cols),
                                       lambda b, i: (b, i, 0, 0)),
            ),
            compiler_params=pltpu.CompilerParams(
                dimension_semantics=dims,
                vmem_limit_bytes=vmem_limit),
            cost_estimate=pl.CostEstimate(flops=int(flops), transcendentals=0,
                                          bytes_accessed=int(bytes_accessed)),
        )(*operands)

    slabs = None
    if not strip_mode:
        # Resident image: its block index is constant over the row axis, so a
        # single VMEM buffer is enough.  Fall back if Buffered(1) is rejected.
        try:
            slabs = run(pl.Buffered(1))
            jax.block_until_ready(slabs)
        except Exception:
            slabs = None
    if slabs is None:
        slabs = run(None)

    # Wrapper-side layout plumbing back to the (B, N, C, wh, ww) contract.
    slabs = slabs[:, :n_h]                                   # drop padded rows
    out = slabs.reshape(B, n_h, C, wh, n_w, ww)
    out = out.transpose(0, 1, 4, 2, 3, 5)                    # (B,n_h,n_w,C,wh,ww)
    return out.reshape(B, n_h * n_w, C, wh, ww)


class ExtractTensorPatches:
    """JAX/Pallas port of kornia.contrib.ExtractTensorPatches (no parameters)."""

    def __init__(self, window_size, stride=1, padding=0, allow_auto_padding=False):
        self.window_size = window_size
        self.stride = stride
        self.padding = padding
        self.allow_auto_padding = allow_auto_padding

    def __call__(self, x):
        return extract_tensor_patches(x, self.window_size, stride=self.stride,
                                      padding=self.padding,
                                      allow_auto_padding=self.allow_auto_padding)


# ----------------------------- reference (pure JAX) ---------------------------

def _reference(x, window_size, stride):
    wh, ww = _pair(window_size)
    sh, sw = _pair(stride)
    _, _, H, W = x.shape
    n_h = (H - wh) // sh + 1
    n_w = (W - ww) // sw + 1
    patches = []
    for i in range(n_h):
        for j in range(n_w):
            patches.append(x[:, :, i * sh:i * sh + wh, j * sw:j * sw + ww])
    return jnp.stack(patches, axis=1)  # (B, N, C, wh, ww)


# ----------------------------- main -------------------------------------------

if __name__ == "__main__":
    key = jax.random.PRNGKey(0)
    B, C, H, W = 2, 4, 16, 16
    x = jax.random.normal(key, (B, C, H, W), dtype=jnp.float32)

    # 1) overlapping windows, f32 -> resident-image + chunked lane-gather path.
    m1 = ExtractTensorPatches(window_size=(4, 4), stride=(2, 2))
    o1 = jax.block_until_ready(m1(x))
    r1 = _reference(x, (4, 4), (2, 2))
    assert o1.shape == r1.shape and o1.dtype == x.dtype, (o1.shape, r1.shape)
    assert jnp.allclose(o1, r1), "mismatch (overlapping stride, f32)"

    # 2) non-overlapping windows -> strip-tiled input + pure-copy fast path.
    m2 = ExtractTensorPatches(window_size=(4, 4), stride=(4, 4))
    o2 = jax.block_until_ready(m2(x))
    r2 = _reference(x, (4, 4), (4, 4))
    assert o2.shape == r2.shape and jnp.allclose(o2, r2), "mismatch (tiled)"

    # 3) auto-padding path (window/stride do not fit the image).
    m3 = ExtractTensorPatches(window_size=(3, 3), stride=(3, 3),
                              allow_auto_padding=True)
    o3 = jax.block_until_ready(m3(x))
    xp = jnp.pad(x, ((0, 0), (0, 0), (1, 1), (1, 1)))
    r3 = _reference(xp, (3, 3), (3, 3))
    assert o3.shape == r3.shape and jnp.allclose(o3, r3), "mismatch (auto pad)"

    # 4) overlapping windows, bf16 -> exercises the exact MXU one-hot gather.
    xb = x.astype(jnp.bfloat16)
    m4 = ExtractTensorPatches(window_size=(4, 4), stride=(2, 2))
    o4 = jax.block_until_ready(m4(xb))
    r4 = _reference(xb, (4, 4), (2, 2))
    assert o4.shape == r4.shape and o4.dtype == jnp.bfloat16
    assert jnp.allclose(o4.astype(jnp.float32), r4.astype(jnp.float32)), \
        "mismatch (overlapping stride, bf16 MXU gather)"

    print("KERNEL_OK")
</pallas_src>

<mosaic_0001>
module attributes {stable_mosaic.version = 11 : i64} {
  func.func @kernel(%arg0: i32, %arg1: i32, %arg2: memref<1x4x16x16xf32, #tpu.memory_space<vmem>>, %arg3: memref<1x7x16x28xf32, #tpu.memory_space<vmem>>) attributes {dimension_semantics = [#tpu.dimension_semantics<parallel>, #tpu.dimension_semantics<arbitrary>], iteration_bounds = array<i64: 2, 1>, scalar_prefetch = 0 : i64, scratch_operands = 0 : i64, tpu.core_type = #tpu.core_type<tc>, window_params = [{pipeline_mode = #tpu.pipeline_mode<synchronous>, transform_indices = @transform_0, window_bounds = array<i64: 1, 4, 16, 16>}, {transform_indices = @transform_1, window_bounds = array<i64: 1, 7, 16, 28>}]} {
    %c7_i32 = arith.constant 7 : i32
    %0 = arith.muli %arg1, %c7_i32 : i32
    %c0_i32 = arith.constant 0 : i32
    %1 = arith.addi %0, %c0_i32 : i32
    %c6_i32 = arith.constant 6 : i32
    %2 = arith.minsi %1, %c6_i32 : i32
    %c2_i32 = arith.constant 2 : i32
    %3 = arith.muli %2, %c2_i32 : i32
    %4 = tpu.assume_multiple %3, 2 : i32
    %c0 = arith.constant 0 : index
    %c0_0 = arith.constant 0 : index
    %5 = arith.index_cast %4 : i32 to index
    %c0_1 = arith.constant 0 : index
    %6 = vector.load %arg2[%c0, %c0_0, %5, %c0_1] : memref<1x4x16x16xf32, #tpu.memory_space<vmem>>, vector<1x4x4x16xf32>
    %7 = vector.shape_cast %6 : vector<1x4x4x16xf32> to vector<4x4x16xf32>
    %8 = vector.shape_cast %7 : vector<4x4x16xf32> to vector<16x16xf32>
    %9 = vector.extract_strided_slice %8 {offsets = [0, 0], sizes = [16, 4], strides = [1, 1]} : vector<16x16xf32> to vector<16x4xf32>
    %10 = vector.extract_strided_slice %8 {offsets = [0, 2], sizes = [16, 4], strides = [1, 1]} : vector<16x16xf32> to vector<16x4xf32>
    %11 = vector.extract_strided_slice %8 {offsets = [0, 4], sizes = [16, 4], strides = [1, 1]} : vector<16x16xf32> to vector<16x4xf32>
    %12 = vector.extract_strided_slice %8 {offsets = [0, 6], sizes = [16, 4], strides = [1, 1]} : vector<16x16xf32> to vector<16x4xf32>
    %13 = vector.extract_strided_slice %8 {offsets = [0, 8], sizes = [16, 4], strides = [1, 1]} : vector<16x16xf32> to vector<16x4xf32>
    %14 = vector.extract_strided_slice %8 {offsets = [0, 10], sizes = [16, 4], strides = [1, 1]} : vector<16x16xf32> to vector<16x4xf32>
    %15 = vector.extract_strided_slice %8 {offsets = [0, 12], sizes = [16, 4], strides = [1, 1]} : vector<16x16xf32> to vector<16x4xf32>
    %16 = tpu.concatenate %9, %10, %11, %12, %13, %14, %15 in 1 : vector<16x4xf32>, vector<16x4xf32>, vector<16x4xf32>, vector<16x4xf32>, vector<16x4xf32>, vector<16x4xf32>, vector<16x4xf32> -> vector<16x28xf32>
    %c0_2 = arith.constant 0 : index
    %c0_3 = arith.constant 0 : index
    %c0_4 = arith.constant 0 : index
    %c0_5 = arith.constant 0 : index
    %17 = vector.load %arg3[%c0_2, %c0_3, %c0_4, %c0_5] : memref<1x7x16x28xf32, #tpu.memory_space<vmem>>, vector<1x1x16x28xf32>
    %18 = vector.shape_cast %17 : vector<1x1x16x28xf32> to vector<16x28xf32>
    %19 = vector.shape_cast %16 : vector<16x28xf32> to vector<1x1x16x28xf32>
    tpu.vector_store %arg3[%c0_2, %c0_3, %c0_4, %c0_5], %19 {strides = array<i32>} : memref<1x7x16x28xf32, #tpu.memory_space<vmem>>, vector<1x1x16x28xf32>,
    %c7_i32_6 = arith.constant 7 : i32
    %20 = arith.muli %arg1, %c7_i32_6 : i32
    %c1_i32 = arith.constant 1 : i32
    %21 = arith.addi %20, %c1_i32 : i32
    %c6_i32_7 = arith.constant 6 : i32
    %22 = arith.minsi %21, %c6_i32_7 : i32
    %c2_i32_8 = arith.constant 2 : i32
    %23 = arith.muli %22, %c2_i32_8 : i32
    %24 = tpu.assume_multiple %23, 2 : i32
    %c0_9 = arith.constant 0 : index
    %c0_10 = arith.constant 0 : index
    %25 = arith.index_cast %24 : i32 to index
    %c0_11 = arith.constant 0 : index
    %26 = vector.load %arg2[%c0_9, %c0_10, %25, %c0_11] : memref<1x4x16x16xf32, #tpu.memory_space<vmem>>, vector<1x4x4x16xf32>
    %27 = vector.shape_cast %26 : vector<1x4x4x16xf32> to vector<4x4x16xf32>
    %28 = vector.shape_cast %27 : vector<4x4x16xf32> to vector<16x16xf32>
    %29 = vector.extract_strided_slice %28 {offsets = [0, 0], sizes = [16, 4], strides = [1, 1]} : vector<16x16xf32> to vector<16x4xf32>
    %30 = vector.extract_strided_slice %28 {offsets = [0, 2], sizes = [16, 4], strides = [1, 1]} : vector<16x16xf32> to vector<16x4xf32>
    %31 = vector.extract_strided_slice %28 {offsets = [0, 4], sizes = [16, 4], strides = [1, 1]} : vector<16x16xf32> to vector<16x4xf32>
    %32 = vector.extract_strided_slice %28 {offsets = [0, 6], sizes = [16, 4], strides = [1, 1]} : vector<16x16xf32> to vector<16x4xf32>
    %33 = vector.extract_strided_slice %28 {offsets = [0, 8], sizes = [16, 4], strides = [1, 1]} : vector<16x16xf32> to vector<16x4xf32>
    %34 = vector.extract_strided_slice %28 {offsets = [0, 10], sizes = [16, 4], strides = [1, 1]} : vector<16x16xf32> to vector<16x4xf32>
    %35 = vector.extract_strided_slice %28 {offsets = [0, 12], sizes = [16, 4], strides = [1, 1]} : vector<16x16xf32> to vector<16x4xf32>
    %36 = tpu.concatenate %29, %30, %31, %32, %33, %34, %35 in 1 : vector<16x4xf32>, vector<16x4xf32>, vector<16x4xf32>, vector<16x4xf32>, vector<16x4xf32>, vector<16x4xf32>, vector<16x4xf32> -> vector<16x28xf32>
    %c0_12 = arith.constant 0 : index
    %c1 = arith.constant 1 : index
    %c0_13 = arith.constant 0 : index
    %c0_14 = arith.constant 0 : index
    %37 = vector.load %arg3[%c0_12, %c1, %c0_13, %c0_14] : memref<1x7x16x28xf32, #tpu.memory_space<vmem>>, vector<1x1x16x28xf32>
    %38 = vector.shape_cast %37 : vector<1x1x16x28xf32> to vector<16x28xf32>
    %39 = vector.shape_cast %36 : vector<16x28xf32> to vector<1x1x16x28xf32>
    tpu.vector_store %arg3[%c0_12, %c1, %c0_13, %c0_14], %39 {strides = array<i32>} : memref<1x7x16x28xf32, #tpu.memory_space<vmem>>, vector<1x1x16x28xf32>,
    %c7_i32_15 = arith.constant 7 : i32
    %40 = arith.muli %arg1, %c7_i32_15 : i32
    %c2_i32_16 = arith.constant 2 : i32
    %41 = arith.addi %40, %c2_i32_16 : i32
    %c6_i32_17 = arith.constant 6 : i32
    %42 = arith.minsi %41, %c6_i32_17 : i32
    %c2_i32_18 = arith.constant 2 : i32
    %43 = arith.muli %42, %c2_i32_18 : i32
    %44 = tpu.assume_multiple %43, 2 : i32
    %c0_19 = arith.constant 0 : index
    %c0_20 = arith.constant 0 : index
    %45 = arith.index_cast %44 : i32 to index
    %c0_21 = arith.constant 0 : index
    %46 = vector.load %arg2[%c0_19, %c0_20, %45, %c0_21] : memref<1x4x16x16xf32, #tpu.memory_space<vmem>>, vector<1x4x4x16xf32>
    %47 = vector.shape_cast %46 : vector<1x4x4x16xf32> to vector<4x4x16xf32>
    %48 = vector.shape_cast %47 : vector<4x4x16xf32> to vector<16x16xf32>
    %49 = vector.extract_strided_slice %48 {offsets = [0, 0], sizes = [16, 4], strides = [1, 1]} : vector<16x16xf32> to vector<16x4xf32>
    %50 = vector.extract_strided_slice %48 {offsets = [0, 2], sizes = [16, 4], strides = [1, 1]} : vector<16x16xf32> to vector<16x4xf32>
    %51 = vector.extract_strided_slice %48 {offsets = [0, 4], sizes = [16, 4], strides = [1, 1]} : vector<16x16xf32> to vector<16x4xf32>
    %52 = vector.extract_strided_slice %48 {offsets = [0, 6], sizes = [16, 4], strides = [1, 1]} : vector<16x16xf32> to vector<16x4xf32>
    %53 = vector.extract_strided_slice %48 {offsets = [0, 8], sizes = [16, 4], strides = [1, 1]} : vector<16x16xf32> to vector<16x4xf32>
    %54 = vector.extract_strided_slice %48 {offsets = [0, 10], sizes = [16, 4], strides = [1, 1]} : vector<16x16xf32> to vector<16x4xf32>
    %55 = vector.extract_strided_slice %48 {offsets = [0, 12], sizes = [16, 4], strides = [1, 1]} : vector<16x16xf32> to vector<16x4xf32>
    %56 = tpu.concatenate %49, %50, %51, %52, %53, %54, %55 in 1 : vector<16x4xf32>, vector<16x4xf32>, vector<16x4xf32>, vector<16x4xf32>, vector<16x4xf32>, vector<16x4xf32>, vector<16x4xf32> -> vector<16x28xf32>
    %c0_22 = arith.constant 0 : index
    %c2 = arith.constant 2 : index
    %c0_23 = arith.constant 0 : index
    %c0_24 = arith.constant 0 : index
    %57 = vector.load %arg3[%c0_22, %c2, %c0_23, %c0_24] : memref<1x7x16x28xf32, #tpu.memory_space<vmem>>, vector<1x1x16x28xf32>
    %58 = vector.shape_cast %57 : vector<1x1x16x28xf32> to vector<16x28xf32>
    %59 = vector.shape_cast %56 : vector<16x28xf32> to vector<1x1x16x28xf32>
    tpu.vector_store %arg3[%c0_22, %c2, %c0_23, %c0_24], %59 {strides = array<i32>} : memref<1x7x16x28xf32, #tpu.memory_space<vmem>>, vector<1x1x16x28xf32>,
    %c7_i32_25 = arith.constant 7 : i32
    %60 = arith.muli %arg1, %c7_i32_25 : i32
    %c3_i32 = arith.constant 3 : i32
    %61 = arith.addi %60, %c3_i32 : i32
    %c6_i32_26 = arith.constant 6 : i32
    %62 = arith.minsi %61, %c6_i32_26 : i32
    %c2_i32_27 = arith.constant 2 : i32
    %63 = arith.muli %62, %c2_i32_27 : i32
    %64 = tpu.assume_multiple %63, 2 : i32
    %c0_28 = arith.constant 0 : index
    %c0_29 = arith.constant 0 : index
    %65 = arith.index_cast %64 : i32 to index
    %c0_30 = arith.constant 0 : index
    %66 = vector.load %arg2[%c0_28, %c0_29, %65, %c0_30] : memref<1x4x16x16xf32, #tpu.memory_space<vmem>>, vector<1x4x4x16xf32>
    %67 = vector.shape_cast %66 : vector<1x4x4x16xf32> to vector<4x4x16xf32>
    %68 = vector.shape_cast %67 : vector<4x4x16xf32> to vector<16x16xf32>
    %69 = vector.extract_strided_slice %68 {offsets = [0, 0], sizes = [16, 4], strides = [1, 1]} : vector<16x16xf32> to vector<16x4xf32>
    %70 = vector.extract_strided_slice %68 {offsets = [0, 2], sizes = [16, 4], strides = [1, 1]} : vector<16x16xf32> to vector<16x4xf32>
    %71 = vector.extract_strided_slice %68 {offsets = [0, 4], sizes = [16, 4], strides = [1, 1]} : vector<16x16xf32> to vector<16x4xf32>
    %72 = vector.extract_strided_slice %68 {offsets = [0, 6], sizes = [16, 4], strides = [1, 1]} : vector<16x16xf32> to vector<16x4xf32>
    %73 = vector.extract_strided_slice %68 {offsets = [0, 8], sizes = [16, 4], strides = [1, 1]} : vector<16x16xf32> to vector<16x4xf32>
    %74 = vector.extract_strided_slice %68 {offsets = [0, 10], sizes = [16, 4], strides = [1, 1]} : vector<16x16xf32> to vector<16x4xf32>
    %75 = vector.extract_strided_slice %68 {offsets = [0, 12], sizes = [16, 4], strides = [1, 1]} : vector<16x16xf32> to vector<16x4xf32>
    %76 = tpu.concatenate %69, %70, %71, %72, %73, %74, %75 in 1 : vector<16x4xf32>, vector<16x4xf32>, vector<16x4xf32>, vector<16x4xf32>, vector<16x4xf32>, vector<16x4xf32>, vector<16x4xf32> -> vector<16x28xf32>
    %c0_31 = arith.constant 0 : index
    %c3 = arith.constant 3 : index
    %c0_32 = arith.constant 0 : index
    %c0_33 = arith.constant 0 : index
    %77 = vector.load %arg3[%c0_31, %c3, %c0_32, %c0_33] : memref<1x7x16x28xf32, #tpu.memory_space<vmem>>, vector<1x1x16x28xf32>
    %78 = vector.shape_cast %77 : vector<1x1x16x28xf32> to vector<16x28xf32>
    %79 = vector.shape_cast %76 : vector<16x28xf32> to vector<1x1x16x28xf32>
    tpu.vector_store %arg3[%c0_31, %c3, %c0_32, %c0_33], %79 {strides = array<i32>} : memref<1x7x16x28xf32, #tpu.memory_space<vmem>>, vector<1x1x16x28xf32>,
    %c7_i32_34 = arith.constant 7 : i32
    %80 = arith.muli %arg1, %c7_i32_34 : i32
    %c4_i32 = arith.constant 4 : i32
    %81 = arith.addi %80, %c4_i32 : i32
    %c6_i32_35 = arith.constant 6 : i32
    %82 = arith.minsi %81, %c6_i32_35 : i32
    %c2_i32_36 = arith.constant 2 : i32
    %83 = arith.muli %82, %c2_i32_36 : i32
    %84 = tpu.assume_multiple %83, 2 : i32
    %c0_37 = arith.constant 0 : index
    %c0_38 = arith.constant 0 : index
    %85 = arith.index_cast %84 : i32 to index
    %c0_39 = arith.constant 0 : index
    %86 = vector.load %arg2[%c0_37, %c0_38, %85, %c0_39] : memref<1x4x16x16xf32, #tpu.memory_space<vmem>>, vector<1x4x4x16xf32>
    %87 = vector.shape_cast %86 : vector<1x4x4x16xf32> to vector<4x4x16xf32>
    %88 = vector.shape_cast %87 : vector<4x4x16xf32> to vector<16x16xf32>
    %89 = vector.extract_strided_slice %88 {offsets = [0, 0], sizes = [16, 4], strides = [1, 1]} : vector<16x16xf32> to vector<16x4xf32>
    %90 = vector.extract_strided_slice %88 {offsets = [0, 2], sizes = [16, 4], strides = [1, 1]} : vector<16x16xf32> to vector<16x4xf32>
    %91 = vector.extract_strided_slice %88 {offsets = [0, 4], sizes = [16, 4], strides = [1, 1]} : vector<16x16xf32> to vector<16x4xf32>
    %92 = vector.extract_strided_slice %88 {offsets = [0, 6], sizes = [16, 4], strides = [1, 1]} : vector<16x16xf32> to vector<16x4xf32>
    %93 = vector.extract_strided_slice %88 {offsets = [0, 8], sizes = [16, 4], strides = [1, 1]} : vector<16x16xf32> to vector<16x4xf32>
    %94 = vector.extract_strided_slice %88 {offsets = [0, 10], sizes = [16, 4], strides = [1, 1]} : vector<16x16xf32> to vector<16x4xf32>
    %95 = vector.extract_strided_slice %88 {offsets = [0, 12], sizes = [16, 4], strides = [1, 1]} : vector<16x16xf32> to vector<16x4xf32>
    %96 = tpu.concatenate %89, %90, %91, %92, %93, %94, %95 in 1 : vector<16x4xf32>, vector<16x4xf32>, vector<16x4xf32>, vector<16x4xf32>, vector<16x4xf32>, vector<16x4xf32>, vector<16x4xf32> -> vector<16x28xf32>
    %c0_40 = arith.constant 0 : index
    %c4 = arith.constant 4 : index
    %c0_41 = arith.constant 0 : index
    %c0_42 = arith.constant 0 : index
    %97 = vector.load %arg3[%c0_40, %c4, %c0_41, %c0_42] : memref<1x7x16x28xf32, #tpu.memory_space<vmem>>, vector<1x1x16x28xf32>
    %98 = vector.shape_cast %97 : vector<1x1x16x28xf32> to vector<16x28xf32>
    %99 = vector.shape_cast %96 : vector<16x28xf32> to vector<1x1x16x28xf32>
    tpu.vector_store %arg3[%c0_40, %c4, %c0_41, %c0_42], %99 {strides = array<i32>} : memref<1x7x16x28xf32, #tpu.memory_space<vmem>>, vector<1x1x16x28xf32>,
    %c7_i32_43 = arith.constant 7 : i32
    %100 = arith.muli %arg1, %c7_i32_43 : i32
    %c5_i32 = arith.constant 5 : i32
    %101 = arith.addi %100, %c5_i32 : i32
    %c6_i32_44 = arith.constant 6 : i32
    %102 = arith.minsi %101, %c6_i32_44 : i32
    %c2_i32_45 = arith.constant 2 : i32
    %103 = arith.muli %102, %c2_i32_45 : i32
    %104 = tpu.assume_multiple %103, 2 : i32
    %c0_46 = arith.constant 0 : index
    %c0_47 = arith.constant 0 : index
    %105 = arith.index_cast %104 : i32 to index
    %c0_48 = arith.constant 0 : index
    %106 = vector.load %arg2[%c0_46, %c0_47, %105, %c0_48] : memref<1x4x16x16xf32, #tpu.memory_space<vmem>>, vector<1x4x4x16xf32>
    %107 = vector.shape_cast %106 : vector<1x4x4x16xf32> to vector<4x4x16xf32>
    %108 = vector.shape_cast %107 : vector<4x4x16xf32> to vector<16x16xf32>
    %109 = vector.extract_strided_slice %108 {offsets = [0, 0], sizes = [16, 4], strides = [1, 1]} : vector<16x16xf32> to vector<16x4xf32>
    %110 = vector.extract_strided_slice %108 {offsets = [0, 2], sizes = [16, 4], strides = [1, 1]} : vector<16x16xf32> to vector<16x4xf32>
    %111 = vector.extract_strided_slice %108 {offsets = [0, 4], sizes = [16, 4], strides = [1, 1]} : vector<16x16xf32> to vector<16x4xf32>
    %112 = vector.extract_strided_slice %108 {offsets = [0, 6], sizes = [16, 4], strides = [1, 1]} : vector<16x16xf32> to vector<16x4xf32>
    %113 = vector.extract_strided_slice %108 {offsets = [0, 8], sizes = [16, 4], strides = [1, 1]} : vector<16x16xf32> to vector<16x4xf32>
    %114 = vector.extract_strided_slice %108 {offsets = [0, 10], sizes = [16, 4], strides = [1, 1]} : vector<16x16xf32> to vector<16x4xf32>
    %115 = vector.extract_strided_slice %108 {offsets = [0, 12], sizes = [16, 4], strides = [1, 1]} : vector<16x16xf32> to vector<16x4xf32>
    %116 = tpu.concatenate %109, %110, %111, %112, %113, %114, %115 in 1 : vector<16x4xf32>, vector<16x4xf32>, vector<16x4xf32>, vector<16x4xf32>, vector<16x4xf32>, vector<16x4xf32>, vector<16x4xf32> -> vector<16x28xf32>
    %c0_49 = arith.constant 0 : index
    %c5 = arith.constant 5 : index
    %c0_50 = arith.constant 0 : index
    %c0_51 = arith.constant 0 : index
    %117 = vector.load %arg3[%c0_49, %c5, %c0_50, %c0_51] : memref<1x7x16x28xf32, #tpu.memory_space<vmem>>, vector<1x1x16x28xf32>
    %118 = vector.shape_cast %117 : vector<1x1x16x28xf32> to vector<16x28xf32>
    %119 = vector.shape_cast %116 : vector<16x28xf32> to vector<1x1x16x28xf32>
    tpu.vector_store %arg3[%c0_49, %c5, %c0_50, %c0_51], %119 {strides = array<i32>} : memref<1x7x16x28xf32, #tpu.memory_space<vmem>>, vector<1x1x16x28xf32>,
    %c7_i32_52 = arith.constant 7 : i32
    %120 = arith.muli %arg1, %c7_i32_52 : i32
    %c6_i32_53 = arith.constant 6 : i32
    %121 = arith.addi %120, %c6_i32_53 : i32
    %c6_i32_54 = arith.constant 6 : i32
    %122 = arith.minsi %121, %c6_i32_54 : i32
    %c2_i32_55 = arith.constant 2 : i32
    %123 = arith.muli %122, %c2_i32_55 : i32
    %124 = tpu.assume_multiple %123, 2 : i32
    %c0_56 = arith.constant 0 : index
    %c0_57 = arith.constant 0 : index
    %125 = arith.index_cast %124 : i32 to index
    %c0_58 = arith.constant 0 : index
    %126 = vector.load %arg2[%c0_56, %c0_57, %125, %c0_58] : memref<1x4x16x16xf32, #tpu.memory_space<vmem>>, vector<1x4x4x16xf32>
    %127 = vector.shape_cast %126 : vector<1x4x4x16xf32> to vector<4x4x16xf32>
    %128 = vector.shape_cast %127 : vector<4x4x16xf32> to vector<16x16xf32>
    %129 = vector.extract_strided_slice %128 {offsets = [0, 0], sizes = [16, 4], strides = [1, 1]} : vector<16x16xf32> to vector<16x4xf32>
    %130 = vector.extract_strided_slice %128 {offsets = [0, 2], sizes = [16, 4], strides = [1, 1]} : vector<16x16xf32> to vector<16x4xf32>
    %131 = vector.extract_strided_slice %128 {offsets = [0, 4], sizes = [16, 4], strides = [1, 1]} : vector<16x16xf32> to vector<16x4xf32>
    %132 = vector.extract_strided_slice %128 {offsets = [0, 6], sizes = [16, 4], strides = [1, 1]} : vector<16x16xf32> to vector<16x4xf32>
    %133 = vector.extract_strided_slice %128 {offsets = [0, 8], sizes = [16, 4], strides = [1, 1]} : vector<16x16xf32> to vector<16x4xf32>
    %134 = vector.extract_strided_slice %128 {offsets = [0, 10], sizes = [16, 4], strides = [1, 1]} : vector<16x16xf32> to vector<16x4xf32>
    %135 = vector.extract_strided_slice %128 {offsets = [0, 12], sizes = [16, 4], strides = [1, 1]} : vector<16x16xf32> to vector<16x4xf32>
    %136 = tpu.concatenate %129, %130, %131, %132, %133, %134, %135 in 1 : vector<16x4xf32>, vector<16x4xf32>, vector<16x4xf32>, vector<16x4xf32>, vector<16x4xf32>, vector<16x4xf32>, vector<16x4xf32> -> vector<16x28xf32>
    %c0_59 = arith.constant 0 : index
    %c6 = arith.constant 6 : index
    %c0_60 = arith.constant 0 : index
    %c0_61 = arith.constant 0 : index
    %137 = vector.load %arg3[%c0_59, %c6, %c0_60, %c0_61] : memref<1x7x16x28xf32, #tpu.memory_space<vmem>>, vector<1x1x16x28xf32>
    %138 = vector.shape_cast %137 : vector<1x1x16x28xf32> to vector<16x28xf32>
    %139 = vector.shape_cast %136 : vector<16x28xf32> to vector<1x1x16x28xf32>
    tpu.vector_store %arg3[%c0_59, %c6, %c0_60, %c0_61], %139 {strides = array<i32>} : memref<1x7x16x28xf32, #tpu.memory_space<vmem>>, vector<1x1x16x28xf32>,
    return
  }
  func.func @transform_0(%arg0: i32, %arg1: i32) -> (i32, i32, i32, i32) {
    %c0_i32 = arith.constant 0 : i32
    %c0_i32_0 = arith.constant 0 : i32
    %c0_i32_1 = arith.constant 0 : i32
    %c0_i32_2 = arith.constant 0 : i32
    return %arg0, %c0_i32, %c0_i32_0, %c0_i32_1 : i32, i32, i32, i32
  }
  func.func @transform_1(%arg0: i32, %arg1: i32) -> (i32, i32, i32, i32) {
    %c0_i32 = arith.constant 0 : i32
    %c0_i32_0 = arith.constant 0 : i32
    %c0_i32_1 = arith.constant 0 : i32
    return %arg0, %arg1, %c0_i32, %c0_i32_0 : i32, i32, i32, i32
  }
}

module attributes {stable_mosaic.version = 11 : i64} {
  func.func @kernel(%arg0: i32, %arg1: i32, %arg2: memref<1x4x16x16xf32, #tpu.memory_space<vmem>>, %arg3: memref<1x7x16x28xf32, #tpu.memory_space<vmem>>) attributes {dimension_semantics = [#tpu.dimension_semantics<parallel>, #tpu.dimension_semantics<arbitrary>], iteration_bounds = array<i64: 2, 1>, scalar_prefetch = 0 : i64, scratch_operands = 0 : i64, tpu.core_type = #tpu.core_type<tc>, window_params = [{transform_indices = @transform_0, window_bounds = array<i64: 1, 4, 16, 16>}, {transform_indices = @transform_1, window_bounds = array<i64: 1, 7, 16, 28>}]} {
    %c7_i32 = arith.constant 7 : i32
    %0 = arith.muli %arg1, %c7_i32 : i32
    %c0_i32 = arith.constant 0 : i32
    %1 = arith.addi %0, %c0_i32 : i32
    %c6_i32 = arith.constant 6 : i32
    %2 = arith.minsi %1, %c6_i32 : i32
    %c2_i32 = arith.constant 2 : i32
    %3 = arith.muli %2, %c2_i32 : i32
    %4 = tpu.assume_multiple %3, 2 : i32
    %c0 = arith.constant 0 : index
    %c0_0 = arith.constant 0 : index
    %5 = arith.index_cast %4 : i32 to index
    %c0_1 = arith.constant 0 : index
    %6 = vector.load %arg2[%c0, %c0_0, %5, %c0_1] : memref<1x4x16x16xf32, #tpu.memory_space<vmem>>, vector<1x4x4x16xf32>
    %7 = vector.shape_cast %6 : vector<1x4x4x16xf32> to vector<4x4x16xf32>
    %8 = vector.shape_cast %7 : vector<4x4x16xf32> to vector<16x16xf32>
    %9 = vector.extract_strided_slice %8 {offsets = [0, 0], sizes = [16, 4], strides = [1, 1]} : vector<16x16xf32> to vector<16x4xf32>
    %10 = vector.extract_strided_slice %8 {offsets = [0, 2], sizes = [16, 4], strides = [1, 1]} : vector<16x16xf32> to vector<16x4xf32>
    %11 = vector.extract_strided_slice %8 {offsets = [0, 4], sizes = [16, 4], strides = [1, 1]} : vector<16x16xf32> to vector<16x4xf32>
    %12 = vector.extract_strided_slice %8 {offsets = [0, 6], sizes = [16, 4], strides = [1, 1]} : vector<16x16xf32> to vector<16x4xf32>
    %13 = vector.extract_strided_slice %8 {offsets = [0, 8], sizes = [16, 4], strides = [1, 1]} : vector<16x16xf32> to vector<16x4xf32>
    %14 = vector.extract_strided_slice %8 {offsets = [0, 10], sizes = [16, 4], strides = [1, 1]} : vector<16x16xf32> to vector<16x4xf32>
    %15 = vector.extract_strided_slice %8 {offsets = [0, 12], sizes = [16, 4], strides = [1, 1]} : vector<16x16xf32> to vector<16x4xf32>
    %16 = tpu.concatenate %9, %10, %11, %12, %13, %14, %15 in 1 : vector<16x4xf32>, vector<16x4xf32>, vector<16x4xf32>, vector<16x4xf32>, vector<16x4xf32>, vector<16x4xf32>, vector<16x4xf32> -> vector<16x28xf32>
    %c0_2 = arith.constant 0 : index
    %c0_3 = arith.constant 0 : index
    %c0_4 = arith.constant 0 : index
    %c0_5 = arith.constant 0 : index
    %17 = vector.load %arg3[%c0_2, %c0_3, %c0_4, %c0_5] : memref<1x7x16x28xf32, #tpu.memory_space<vmem>>, vector<1x1x16x28xf32>
    %18 = vector.shape_cast %17 : vector<1x1x16x28xf32> to vector<16x28xf32>
    %19 = vector.shape_cast %16 : vector<16x28xf32> to vector<1x1x16x28xf32>
    tpu.vector_store %arg3[%c0_2, %c0_3, %c0_4, %c0_5], %19 {strides = array<i32>} : memref<1x7x16x28xf32, #tpu.memory_space<vmem>>, vector<1x1x16x28xf32>,
    %c7_i32_6 = arith.constant 7 : i32
    %20 = arith.muli %arg1, %c7_i32_6 : i32
    %c1_i32 = arith.constant 1 : i32
    %21 = arith.addi %20, %c1_i32 : i32
    %c6_i32_7 = arith.constant 6 : i32
    %22 = arith.minsi %21, %c6_i32_7 : i32
    %c2_i32_8 = arith.constant 2 : i32
    %23 = arith.muli %22, %c2_i32_8 : i32
    %24 = tpu.assume_multiple %23, 2 : i32
    %c0_9 = arith.constant 0 : index
    %c0_10 = arith.constant 0 : index
    %25 = arith.index_cast %24 : i32 to index
    %c0_11 = arith.constant 0 : index
    %26 = vector.load %arg2[%c0_9, %c0_10, %25, %c0_11] : memref<1x4x16x16xf32, #tpu.memory_space<vmem>>, vector<1x4x4x16xf32>
    %27 = vector.shape_cast %26 : vector<1x4x4x16xf32> to vector<4x4x16xf32>
    %28 = vector.shape_cast %27 : vector<4x4x16xf32> to vector<16x16xf32>
    %29 = vector.extract_strided_slice %28 {offsets = [0, 0], sizes = [16, 4], strides = [1, 1]} : vector<16x16xf32> to vector<16x4xf32>
    %30 = vector.extract_strided_slice %28 {offsets = [0, 2], sizes = [16, 4], strides = [1, 1]} : vector<16x16xf32> to vector<16x4xf32>
    %31 = vector.extract_strided_slice %28 {offsets = [0, 4], sizes = [16, 4], strides = [1, 1]} : vector<16x16xf32> to vector<16x4xf32>
    %32 = vector.extract_strided_slice %28 {offsets = [0, 6], sizes = [16, 4], strides = [1, 1]} : vector<16x16xf32> to vector<16x4xf32>
    %33 = vector.extract_strided_slice %28 {offsets = [0, 8], sizes = [16, 4], strides = [1, 1]} : vector<16x16xf32> to vector<16x4xf32>
    %34 = vector.extract_strided_slice %28 {offsets = [0, 10], sizes = [16, 4], strides = [1, 1]} : vector<16x16xf32> to vector<16x4xf32>
    %35 = vector.extract_strided_slice %28 {offsets = [0, 12], sizes = [16, 4], strides = [1, 1]} : vector<16x16xf32> to vector<16x4xf32>
    %36 = tpu.concatenate %29, %30, %31, %32, %33, %34, %35 in 1 : vector<16x4xf32>, vector<16x4xf32>, vector<16x4xf32>, vector<16x4xf32>, vector<16x4xf32>, vector<16x4xf32>, vector<16x4xf32> -> vector<16x28xf32>
    %c0_12 = arith.constant 0 : index
    %c1 = arith.constant 1 : index
    %c0_13 = arith.constant 0 : index
    %c0_14 = arith.constant 0 : index
    %37 = vector.load %arg3[%c0_12, %c1, %c0_13, %c0_14] : memref<1x7x16x28xf32, #tpu.memory_space<vmem>>, vector<1x1x16x28xf32>
    %38 = vector.shape_cast %37 : vector<1x1x16x28xf32> to vector<16x28xf32>
    %39 = vector.shape_cast %36 : vector<16x28xf32> to vector<1x1x16x28xf32>
    tpu.vector_store %arg3[%c0_12, %c1, %c0_13, %c0_14], %39 {strides = array<i32>} : memref<1x7x16x28xf32, #tpu.memory_space<vmem>>, vector<1x1x16x28xf32>,
    %c7_i32_15 = arith.constant 7 : i32
    %40 = arith.muli %arg1, %c7_i32_15 : i32
    %c2_i32_16 = arith.constant 2 : i32
    %41 = arith.addi %40, %c2_i32_16 : i32
    %c6_i32_17 = arith.constant 6 : i32
    %42 = arith.minsi %41, %c6_i32_17 : i32
    %c2_i32_18 = arith.constant 2 : i32
    %43 = arith.muli %42, %c2_i32_18 : i32
    %44 = tpu.assume_multiple %43, 2 : i32
    %c0_19 = arith.constant 0 : index
    %c0_20 = arith.constant 0 : index
    %45 = arith.index_cast %44 : i32 to index
    %c0_21 = arith.constant 0 : index
    %46 = vector.load %arg2[%c0_19, %c0_20, %45, %c0_21] : memref<1x4x16x16xf32, #tpu.memory_space<vmem>>, vector<1x4x4x16xf32>
    %47 = vector.shape_cast %46 : vector<1x4x4x16xf32> to vector<4x4x16xf32>
    %48 = vector.shape_cast %47 : vector<4x4x16xf32> to vector<16x16xf32>
    %49 = vector.extract_strided_slice %48 {offsets = [0, 0], sizes = [16, 4], strides = [1, 1]} : vector<16x16xf32> to vector<16x4xf32>
    %50 = vector.extract_strided_slice %48 {offsets = [0, 2], sizes = [16, 4], strides = [1, 1]} : vector<16x16xf32> to vector<16x4xf32>
    %51 = vector.extract_strided_slice %48 {offsets = [0, 4], sizes = [16, 4], strides = [1, 1]} : vector<16x16xf32> to vector<16x4xf32>
    %52 = vector.extract_strided_slice %48 {offsets = [0, 6], sizes = [16, 4], strides = [1, 1]} : vector<16x16xf32> to vector<16x4xf32>
    %53 = vector.extract_strided_slice %48 {offsets = [0, 8], sizes = [16, 4], strides = [1, 1]} : vector<16x16xf32> to vector<16x4xf32>
    %54 = vector.extract_strided_slice %48 {offsets = [0, 10], sizes = [16, 4], strides = [1, 1]} : vector<16x16xf32> to vector<16x4xf32>
    %55 = vector.extract_strided_slice %48 {offsets = [0, 12], sizes = [16, 4], strides = [1, 1]} : vector<16x16xf32> to vector<16x4xf32>
    %56 = tpu.concatenate %49, %50, %51, %52, %53, %54, %55 in 1 : vector<16x4xf32>, vector<16x4xf32>, vector<16x4xf32>, vector<16x4xf32>, vector<16x4xf32>, vector<16x4xf32>, vector<16x4xf32> -> vector<16x28xf32>
    %c0_22 = arith.constant 0 : index
    %c2 = arith.constant 2 : index
    %c0_23 = arith.constant 0 : index
    %c0_24 = arith.constant 0 : index
    %57 = vector.load %arg3[%c0_22, %c2, %c0_23, %c0_24] : memref<1x7x16x28xf32, #tpu.memory_space<vmem>>, vector<1x1x16x28xf32>
    %58 = vector.shape_cast %57 : vector<1x1x16x28xf32> to vector<16x28xf32>
    %59 = vector.shape_cast %56 : vector<16x28xf32> to vector<1x1x16x28xf32>
    tpu.vector_store %arg3[%c0_22, %c2, %c0_23, %c0_24], %59 {strides = array<i32>} : memref<1x7x16x28xf32, #tpu.memory_space<vmem>>, vector<1x1x16x28xf32>,
    %c7_i32_25 = arith.constant 7 : i32
    %60 = arith.muli %arg1, %c7_i32_25 : i32
    %c3_i32 = arith.constant 3 : i32
    %61 = arith.addi %60, %c3_i32 : i32
    %c6_i32_26 = arith.constant 6 : i32
    %62 = arith.minsi %61, %c6_i32_26 : i32
    %c2_i32_27 = arith.constant 2 : i32
    %63 = arith.muli %62, %c2_i32_27 : i32
    %64 = tpu.assume_multiple %63, 2 : i32
    %c0_28 = arith.constant 0 : index
    %c0_29 = arith.constant 0 : index
    %65 = arith.index_cast %64 : i32 to index
    %c0_30 = arith.constant 0 : index
    %66 = vector.load %arg2[%c0_28, %c0_29, %65, %c0_30] : memref<1x4x16x16xf32, #tpu.memory_space<vmem>>, vector<1x4x4x16xf32>
    %67 = vector.shape_cast %66 : vector<1x4x4x16xf32> to vector<4x4x16xf32>
    %68 = vector.shape_cast %67 : vector<4x4x16xf32> to vector<16x16xf32>
    %69 = vector.extract_strided_slice %68 {offsets = [0, 0], sizes = [16, 4], strides = [1, 1]} : vector<16x16xf32> to vector<16x4xf32>
    %70 = vector.extract_strided_slice %68 {offsets = [0, 2], sizes = [16, 4], strides = [1, 1]} : vector<16x16xf32> to vector<16x4xf32>
    %71 = vector.extract_strided_slice %68 {offsets = [0, 4], sizes = [16, 4], strides = [1, 1]} : vector<16x16xf32> to vector<16x4xf32>
    %72 = vector.extract_strided_slice %68 {offsets = [0, 6], sizes = [16, 4], strides = [1, 1]} : vector<16x16xf32> to vector<16x4xf32>
    %73 = vector.extract_strided_slice %68 {offsets = [0, 8], sizes = [16, 4], strides = [1, 1]} : vector<16x16xf32> to vector<16x4xf32>
    %74 = vector.extract_strided_slice %68 {offsets = [0, 10], sizes = [16, 4], strides = [1, 1]} : vector<16x16xf32> to vector<16x4xf32>
    %75 = vector.extract_strided_slice %68 {offsets = [0, 12], sizes = [16, 4], strides = [1, 1]} : vector<16x16xf32> to vector<16x4xf32>
    %76 = tpu.concatenate %69, %70, %71, %72, %73, %74, %75 in 1 : vector<16x4xf32>, vector<16x4xf32>, vector<16x4xf32>, vector<16x4xf32>, vector<16x4xf32>, vector<16x4xf32>, vector<16x4xf32> -> vector<16x28xf32>
    %c0_31 = arith.constant 0 : index
    %c3 = arith.constant 3 : index
    %c0_32 = arith.constant 0 : index
    %c0_33 = arith.constant 0 : index
    %77 = vector.load %arg3[%c0_31, %c3, %c0_32, %c0_33] : memref<1x7x16x28xf32, #tpu.memory_space<vmem>>, vector<1x1x16x28xf32>
    %78 = vector.shape_cast %77 : vector<1x1x16x28xf32> to vector<16x28xf32>
    %79 = vector.shape_cast %76 : vector<16x28xf32> to vector<1x1x16x28xf32>
    tpu.vector_store %arg3[%c0_31, %c3, %c0_32, %c0_33], %79 {strides = array<i32>} : memref<1x7x16x28xf32, #tpu.memory_space<vmem>>, vector<1x1x16x28xf32>,
    %c7_i32_34 = arith.constant 7 : i32
    %80 = arith.muli %arg1, %c7_i32_34 : i32
    %c4_i32 = arith.constant 4 : i32
    %81 = arith.addi %80, %c4_i32 : i32
    %c6_i32_35 = arith.constant 6 : i32
    %82 = arith.minsi %81, %c6_i32_35 : i32
    %c2_i32_36 = arith.constant 2 : i32
    %83 = arith.muli %82, %c2_i32_36 : i32
    %84 = tpu.assume_multiple %83, 2 : i32
    %c0_37 = arith.constant 0 : index
    %c0_38 = arith.constant 0 : index
    %85 = arith.index_cast %84 : i32 to index
    %c0_39 = arith.constant 0 : index
    %86 = vector.load %arg2[%c0_37, %c0_38, %85, %c0_39] : memref<1x4x16x16xf32, #tpu.memory_space<vmem>>, vector<1x4x4x16xf32>
    %87 = vector.shape_cast %86 : vector<1x4x4x16xf32> to vector<4x4x16xf32>
    %88 = vector.shape_cast %87 : vector<4x4x16xf32> to vector<16x16xf32>
    %89 = vector.extract_strided_slice %88 {offsets = [0, 0], sizes = [16, 4], strides = [1, 1]} : vector<16x16xf32> to vector<16x4xf32>
    %90 = vector.extract_strided_slice %88 {offsets = [0, 2], sizes = [16, 4], strides = [1, 1]} : vector<16x16xf32> to vector<16x4xf32>
    %91 = vector.extract_strided_slice %88 {offsets = [0, 4], sizes = [16, 4], strides = [1, 1]} : vector<16x16xf32> to vector<16x4xf32>
    %92 = vector.extract_strided_slice %88 {offsets = [0, 6], sizes = [16, 4], strides = [1, 1]} : vector<16x16xf32> to vector<16x4xf32>
    %93 = vector.extract_strided_slice %88 {offsets = [0, 8], sizes = [16, 4], strides = [1, 1]} : vector<16x16xf32> to vector<16x4xf32>
    %94 = vector.extract_strided_slice %88 {offsets = [0, 10], sizes = [16, 4], strides = [1, 1]} : vector<16x16xf32> to vector<16x4xf32>
    %95 = vector.extract_strided_slice %88 {offsets = [0, 12], sizes = [16, 4], strides = [1, 1]} : vector<16x16xf32> to vector<16x4xf32>
    %96 = tpu.concatenate %89, %90, %91, %92, %93, %94, %95 in 1 : vector<16x4xf32>, vector<16x4xf32>, vector<16x4xf32>, vector<16x4xf32>, vector<16x4xf32>, vector<16x4xf32>, vector<16x4xf32> -> vector<16x28xf32>
    %c0_40 = arith.constant 0 : index
    %c4 = arith.constant 4 : index
    %c0_41 = arith.constant 0 : index
    %c0_42 = arith.constant 0 : index
    %97 = vector.load %arg3[%c0_40, %c4, %c0_41, %c0_42] : memref<1x7x16x28xf32, #tpu.memory_space<vmem>>, vector<1x1x16x28xf32>
    %98 = vector.shape_cast %97 : vector<1x1x16x28xf32> to vector<16x28xf32>
    %99 = vector.shape_cast %96 : vector<16x28xf32> to vector<1x1x16x28xf32>
    tpu.vector_store %arg3[%c0_40, %c4, %c0_41, %c0_42], %99 {strides = array<i32>} : memref<1x7x16x28xf32, #tpu.memory_space<vmem>>, vector<1x1x16x28xf32>,
    %c7_i32_43 = arith.constant 7 : i32
    %100 = arith.muli %arg1, %c7_i32_43 : i32
    %c5_i32 = arith.constant 5 : i32
    %101 = arith.addi %100, %c5_i32 : i32
    %c6_i32_44 = arith.constant 6 : i32
    %102 = arith.minsi %101, %c6_i32_44 : i32
    %c2_i32_45 = arith.constant 2 : i32
    %103 = arith.muli %102, %c2_i32_45 : i32
    %104 = tpu.assume_multiple %103, 2 : i32
    %c0_46 = arith.constant 0 : index
    %c0_47 = arith.constant 0 : index
    %105 = arith.index_cast %104 : i32 to index
    %c0_48 = arith.constant 0 : index
    %106 = vector.load %arg2[%c0_46, %c0_47, %105, %c0_48] : memref<1x4x16x16xf32, #tpu.memory_space<vmem>>, vector<1x4x4x16xf32>
    %107 = vector.shape_cast %106 : vector<1x4x4x16xf32> to vector<4x4x16xf32>
    %108 = vector.shape_cast %107 : vector<4x4x16xf32> to vector<16x16xf32>
    %109 = vector.extract_strided_slice %108 {offsets = [0, 0], sizes = [16, 4], strides = [1, 1]} : vector<16x16xf32> to vector<16x4xf32>
    %110 = vector.extract_strided_slice %108 {offsets = [0, 2], sizes = [16, 4], strides = [1, 1]} : vector<16x16xf32> to vector<16x4xf32>
    %111 = vector.extract_strided_slice %108 {offsets = [0, 4], sizes = [16, 4], strides = [1, 1]} : vector<16x16xf32> to vector<16x4xf32>
    %112 = vector.extract_strided_slice %108 {offsets = [0, 6], sizes = [16, 4], strides = [1, 1]} : vector<16x16xf32> to vector<16x4xf32>
    %113 = vector.extract_strided_slice %108 {offsets = [0, 8], sizes = [16, 4], strides = [1, 1]} : vector<16x16xf32> to vector<16x4xf32>
    %114 = vector.extract_strided_slice %108 {offsets = [0, 10], sizes = [16, 4], strides = [1, 1]} : vector<16x16xf32> to vector<16x4xf32>
    %115 = vector.extract_strided_slice %108 {offsets = [0, 12], sizes = [16, 4], strides = [1, 1]} : vector<16x16xf32> to vector<16x4xf32>
    %116 = tpu.concatenate %109, %110, %111, %112, %113, %114, %115 in 1 : vector<16x4xf32>, vector<16x4xf32>, vector<16x4xf32>, vector<16x4xf32>, vector<16x4xf32>, vector<16x4xf32>, vector<16x4xf32> -> vector<16x28xf32>
    %c0_49 = arith.constant 0 : index
    %c5 = arith.constant 5 : index
    %c0_50 = arith.constant 0 : index
    %c0_51 = arith.constant 0 : index
    %117 = vector.load %arg3[%c0_49, %c5, %c0_50, %c0_51] : memref<1x7x16x28xf32, #tpu.memory_space<vmem>>, vector<1x1x16x28xf32>
    %118 = vector.shape_cast %117 : vector<1x1x16x28xf32> to vector<16x28xf32>
    %119 = vector.shape_cast %116 : vector<16x28xf32> to vector<1x1x16x28xf32>
    tpu.vector_store %arg3[%c0_49, %c5, %c0_50, %c0_51], %119 {strides = array<i32>} : memref<1x7x16x28xf32, #tpu.memory_space<vmem>>, vector<1x1x16x28xf32>,
    %c7_i32_52 = arith.constant 7 : i32
    %120 = arith.muli %arg1, %c7_i32_52 : i32
    %c6_i32_53 = arith.constant 6 : i32
    %121 = arith.addi %120, %c6_i32_53 : i32
    %c6_i32_54 = arith.constant 6 : i32
    %122 = arith.minsi %121, %c6_i32_54 : i32
    %c2_i32_55 = arith.constant 2 : i32
    %123 = arith.muli %122, %c2_i32_55 : i32
    %124 = tpu.assume_multiple %123, 2 : i32
    %c0_56 = arith.constant 0 : index
    %c0_57 = arith.constant 0 : index
    %125 = arith.index_cast %124 : i32 to index
    %c0_58 = arith.constant 0 : index
    %126 = vector.load %arg2[%c0_56, %c0_57, %125, %c0_58] : memref<1x4x16x16xf32, #tpu.memory_space<vmem>>, vector<1x4x4x16xf32>
    %127 = vector.shape_cast %126 : vector<1x4x4x16xf32> to vector<4x4x16xf32>
    %128 = vector.shape_cast %127 : vector<4x4x16xf32> to vector<16x16xf32>
    %129 = vector.extract_strided_slice %128 {offsets = [0, 0], sizes = [16, 4], strides = [1, 1]} : vector<16x16xf32> to vector<16x4xf32>
    %130 = vector.extract_strided_slice %128 {offsets = [0, 2], sizes = [16, 4], strides = [1, 1]} : vector<16x16xf32> to vector<16x4xf32>
    %131 = vector.extract_strided_slice %128 {offsets = [0, 4], sizes = [16, 4], strides = [1, 1]} : vector<16x16xf32> to vector<16x4xf32>
    %132 = vector.extract_strided_slice %128 {offsets = [0, 6], sizes = [16, 4], strides = [1, 1]} : vector<16x16xf32> to vector<16x4xf32>
    %133 = vector.extract_strided_slice %128 {offsets = [0, 8], sizes = [16, 4], strides = [1, 1]} : vector<16x16xf32> to vector<16x4xf32>
    %134 = vector.extract_strided_slice %128 {offsets = [0, 10], sizes = [16, 4], strides = [1, 1]} : vector<16x16xf32> to vector<16x4xf32>
    %135 = vector.extract_strided_slice %128 {offsets = [0, 12], sizes = [16, 4], strides = [1, 1]} : vector<16x16xf32> to vector<16x4xf32>
    %136 = tpu.concatenate %129, %130, %131, %132, %133, %134, %135 in 1 : vector<16x4xf32>, vector<16x4xf32>, vector<16x4xf32>, vector<16x4xf32>, vector<16x4xf32>, vector<16x4xf32>, vector<16x4xf32> -> vector<16x28xf32>
    %c0_59 = arith.constant 0 : index
    %c6 = arith.constant 6 : index
    %c0_60 = arith.constant 0 : index
    %c0_61 = arith.constant 0 : index
    %137 = vector.load %arg3[%c0_59, %c6, %c0_60, %c0_61] : memref<1x7x16x28xf32, #tpu.memory_space<vmem>>, vector<1x1x16x28xf32>
    %138 = vector.shape_cast %137 : vector<1x1x16x28xf32> to vector<16x28xf32>
    %139 = vector.shape_cast %136 : vector<16x28xf32> to vector<1x1x16x28xf32>
    tpu.vector_store %arg3[%c0_59, %c6, %c0_60, %c0_61], %139 {strides = array<i32>} : memref<1x7x16x28xf32, #tpu.memory_space<vmem>>, vector<1x1x16x28xf32>,
    return
  }
  func.func @transform_0(%arg0: i32, %arg1: i32) -> (i32, i32, i32, i32) {
    %c0_i32 = arith.constant 0 : i32
    %c0_i32_0 = arith.constant 0 : i32
    %c0_i32_1 = arith.constant 0 : i32
    %c0_i32_2 = arith.constant 0 : i32
    return %arg0, %c0_i32, %c0_i32_0, %c0_i32_1 : i32, i32, i32, i32
  }
  func.func @transform_1(%arg0: i32, %arg1: i32) -> (i32, i32, i32, i32) {
    %c0_i32 = arith.constant 0 : i32
    %c0_i32_0 = arith.constant 0 : i32
    %c0_i32_1 = arith.constant 0 : i32
    return %arg0, %arg1, %c0_i32, %c0_i32_0 : i32, i32, i32, i32
  }
}

</mosaic_0001>

<llo_original>
// kernel: tpu_custom_call.1
$region0: #{tpu_custom_call.1}
  #allocation0 [shape = 'u32[]', space=smem, size = 0x4, offset = 0x4, fixed_abs, tag = 'smem constant byte address 0x4 - core index']
  #allocation1 [shape = 'u32[144,128]{1,0:T(1,128)}', space=vmem, size = 0x12000, scoped, tag = 'internal scratch']
  %s0 = inlined_call_operand.hbm [shape: f32[2,4,16,16], index: 0, kind: input, shape index: {}]
  %s1 = inlined_call_operand.hbm [shape: f32[2,7,16,28], index: 1, kind: output, shape index: {}]
  %s2 = sld [smem:[#allocation0]]
  $region41: #{tpu_custom_call.1} parent=0
    _
  %s4 = ssub.s32 1, %s2
  %s5 = scalar_select 0, %s4, %s2
  $region1: #{tpu_custom_call.1} parent=0
    #allocation2 [shape = 'u8[32768]{0}', space=vmem, size = 0x8000, scoped, tag = 'input window, operand 0, single buffered']
    #allocation3 [shape = 's32[2]{0}', space=sflag, size = 0x8, scoped, tag = 'scoped memory for tpu_custom_call.1']
    #allocation4 [shape = 's32[2]{0}', space=sflag, size = 0x8, scoped, tag = 'scoped memory for tpu_custom_call.1']
    #allocation5 [shape = 'u8[114688]{0}', space=vmem, size = 0x1c000, scoped, tag = 'output window, operand 0']
    %6 = vsyncpa [#allocation3], 0
    %7 = vsyncpa [#allocation4], 0
    %s8 = scalar_lea.sflag [#allocation4], 1
    %9 = vsyncpa %s8, 0
    loop: start=0, step=1, limit=4
    $region2: #{tpu_custom_call.1} parent=1 // loop_pre_header
      _
    $region3: #{tpu_custom_call.1} parent=1 // loop_header
      %s11 = sphi 0, %s15
      %p12 = scmp.ge.s32.totalorder %s11, 4
      %s18 = sphi 0, %s30
      %s19 = sphi 0, %s26
      %s20 = sphi 0, %s18
      %s21 = sphi 0, %s19
      %s22 = sphi 0, %s20
      %s23 = sphi 0, %s21
      %s33 = sphi 0, %s35
      %s36 = sphi 0, %s33
      %s37 = sphi 0, %s36
      %s53 = sphi 0, %s37
      %s61 = sphi 0, %s63
      %s64 = sphi 0, %s61
      %s65 = sphi 0, %s64
      %s81 = sphi 0, %s65
    $region4: #{tpu_custom_call.1} parent=1 // loop_header_branch
      %14 = sbr.rel (%p12) target = $region8
    $region5: #{tpu_custom_call.1} parent=1 // loop_body
      %s16 = ssub.s32 %s11, 1
      %s17 = ssub.s32 %s11, 2
      %s24 = sadd.s32 1, %s19
      %p25 = scmp.ge.s32.totalorder %s24, 1
      %s26 = scalar_select %p25, 0, %s24
      %s27 = sadd.s32 1, %s18
      %s28 = scalar_select %p25, %s27, %s18
      %p29 = scmp.ge.s32.totalorder %s28, 2
      %s30 = scalar_select %p29, 0, %s28
      %s31 = ssub.s32 %s18, %s30
      %p32 = scmp.eq.s32.totalorder %s31, 0
      %s34 = sadd.s32 %s33, 1
      %s35 = scalar_select %p32, %s33, %s34
      %p38 = pneg %p32
      %p39 = scmp.eq.s32.totalorder %s11, 1
      %p40 = por %p38, %p39
      %p41 = scmp.ne.s32.totalorder %s33, %s36
      %p42 = scmp.eq.s32.totalorder %s11, 0
      %p43 = por %p41, %p42
      %p44 = scmp.ne.s32.totalorder %s33, %s36
      %p45 = scmp.eq.s32.totalorder %s16, 1
      %p46 = por %p44, %p45
      %p47 = scmp.ne.s32.totalorder %s36, %s37
      %p48 = scmp.eq.s32.totalorder %s16, 0
      %p49 = por %p47, %p48
      %p50 = scmp.ne.s32.totalorder %s36, %s37
      %p51 = scmp.eq.s32.totalorder %s17, 1
      %p52 = por %p50, %p51
      %p54 = scmp.ne.s32.totalorder %s37, %s53
      %p55 = scmp.eq.s32.totalorder %s17, 0
      %p56 = por %p54, %p55
      %s57 = ssub.s32 %s18, %s30
      %s58 = ssub.s32 %s19, %s26
      %s59 = sor.u32 %s57, %s58
      %p60 = scmp.eq.s32.totalorder %s59, 0
      %s62 = sadd.s32 %s61, 1
      %s63 = scalar_select %p60, %s61, %s62
      %p66 = pneg %p60
      %p67 = scmp.eq.s32.totalorder %s11, 1
      %p68 = por %p66, %p67
      %p69 = scmp.ne.s32.totalorder %s61, %s64
      %p70 = scmp.eq.s32.totalorder %s11, 0
      %p71 = por %p69, %p70
      %p72 = scmp.ne.s32.totalorder %s61, %s64
      %p73 = scmp.eq.s32.totalorder %s16, 1
      %p74 = por %p72, %p73
      %p75 = scmp.ne.s32.totalorder %s64, %s65
      %p76 = scmp.eq.s32.totalorder %s16, 0
      %p77 = por %p75, %p76
      %p78 = scmp.ne.s32.totalorder %s64, %s65
      %p79 = scmp.eq.s32.totalorder %s17, 1
      %p80 = por %p78, %p79
      %p82 = scmp.ne.s32.totalorder %s65, %s81
      %p83 = scmp.eq.s32.totalorder %s17, 0
      %p84 = por %p82, %p83
      %p85 = scmp.le.s32.totalorder 1, %s11
      %p86 = scmp.lt.s32.totalorder %s11, 3
      %p87 = pnand %p85, %p86
      %p88 = pneg %p87
      // Predicated region
      $region9: #{tpu_custom_call.1} parent=5 // pred_check
        _
      $region10: #{tpu_custom_call.1} parent=5 // pred_check_branch
        %90 = sbr.rel (%p87) target = $region12
      $region11: #{tpu_custom_call.1} parent=5 // pred_region
        %s91 = ssub.s32 %s11, 1
        // Predicated region
        $region13: #{tpu_custom_call.1} parent=11 // pred_check
          %p92 = pneg %p49
        $region14: #{tpu_custom_call.1} parent=11 // pred_check_branch
          %94 = sbr.rel (%p92) target = $region16
        $region15: #{tpu_custom_call.1} parent=11 // pred_region
          %s96 = ssub.s32 1024, 1024
          %97 = vsyncadd [#allocation3], %s96
          %s98 = smul.addr %s20, 8
          %s99 = smul.addr %s98, 128
          %s100 = scalar_lea.hbm %s0, %s99
          %s101 = sshll.u32 [#allocation2], 4
          %s102 = int_to_ptr.vmem [resolvable:$true] %s101
          %107 = dma.hbm_to_vmem [thread:$0]  %s100, 1024, %s102, [#allocation3], 128, 128, 8
        $region16: #{tpu_custom_call.1} parent=11 // pred_fallthru
          _
      $region12: #{tpu_custom_call.1} parent=5 // pred_fallthru
        _
      %p108 = scmp.lt.s32.totalorder %s11, 2
      // Predicated region
      $region17: #{tpu_custom_call.1} parent=5 // pred_check
        %p109 = pneg %p108
      $region18: #{tpu_custom_call.1} parent=5 // pred_check_branch
        %111 = sbr.rel (%p109) target = $region20
      $region19: #{tpu_custom_call.1} parent=5 // pred_region
        _
      $region20: #{tpu_custom_call.1} parent=5 // pred_fallthru
        _
      %p112 = scmp.le.s32.totalorder 1, %s11
      %p113 = scmp.lt.s32.totalorder %s11, 3
      %p114 = pnand %p112, %p113
      %p115 = pneg %p114
      // Predicated region
      $region21: #{tpu_custom_call.1} parent=5 // pred_check
        _
      $region22: #{tpu_custom_call.1} parent=5 // pred_check_branch
        %117 = sbr.rel (%p114) target = $region24
      $region23: #{tpu_custom_call.1} parent=5 // pred_region
        %s118 = ssub.s32 %s11, 1
        // Predicated region
        $region25: #{tpu_custom_call.1} parent=23 // pred_check
          %p119 = pneg %p49
        $region26: #{tpu_custom_call.1} parent=23 // pred_check_branch
          %121 = sbr.rel (%p119) target = $region28
        $region27: #{tpu_custom_call.1} parent=23 // pred_region
          %122 = dma.done [#allocation3], 1024
        $region28: #{tpu_custom_call.1} parent=23 // pred_fallthru
          _
        %p123 = pneg %p49
        %p124 = pneg %p46
        %p125 = pneg %p77
        %p126 = pneg %p74
        %s127 = sand.u32 %s64, 1
        %s128 = scalar_lea.sflag [#allocation4], %s127
        %s129 = sand.u32 %s64, 1
        %s130 = smul.addr %s129, 112
        %s131 = scalar_lea.vmem [#allocation5], %s130
        %s132 = smul.u32 7, %s21
        %s133 = smul.u32 %s21, 7
        %p134 = scmp.lt.s32.totalorder %s133, 6
        %s135 = scalar_select %p134, %s133, 6
        %s136 = smul.u32 %s135, 2
        %s137 = scalar_lea.vmem [#allocation2], %s136
        %v138 = vld [vmem:[%s137] sm:$0xf]
        %v139 = vld [vmem:[%s137 + $0x10] sm:$0xf]
        %v140 = vld [vmem:[%s137 + $0x20] sm:$0xf]
        %v141 = vld [vmem:[%s137 + $0x30] sm:$0xf]
        %v146 = vcombine.low %v138, %v139
        %v147 = vcombine.low %v140, %v141
        %150 = vrot.lane.b32.xlu0 %v146, 2
        %v151 = vpop.permute.xlu0 %150
        %152 = vrot.lane.b32.xlu0 %v147, 2
        %v153 = vpop.permute.xlu0 %152
        %156 = vrot.lane.b32.xlu0 %v146, 4
        %v157 = vpop.permute.xlu0 %156
        %158 = vrot.lane.b32.xlu0 %v147, 4
        %v159 = vpop.permute.xlu0 %158
        %162 = vrot.lane.b32.xlu0 %v146, 6
        %v163 = vpop.permute.xlu0 %162
        %164 = vrot.lane.b32.xlu0 %v147, 6
        %v165 = vpop.permute.xlu0 %164
        %168 = vrot.lane.b32.xlu0 %v146, 8
        %v169 = vpop.permute.xlu0 %168
        %170 = vrot.lane.b32.xlu0 %v147, 8
        %v171 = vpop.permute.xlu0 %170
        %174 = vrot.lane.b32.xlu0 %v146, 10
        %v175 = vpop.permute.xlu0 %174
        %176 = vrot.lane.b32.xlu0 %v147, 10
        %v177 = vpop.permute.xlu0 %176
        %180 = vrot.lane.b32.xlu0 %v146, 12
        %v181 = vpop.permute.xlu0 %180
        %182 = vrot.lane.b32.xlu0 %v147, 12
        %v183 = vpop.permute.xlu0 %182
        %vm186 = vcmask 31744
        %v187 = vsel %vm186, %v146, %v151
        %v188 = vsel %vm186, %v147, %v153
        %vm189 = vcmask 64512
        %v190 = vsel %vm189, %v187, %v157
        %v191 = vsel %vm189, %v188, %v159
        %vm192 = vcmask 97280
        %v193 = vsel %vm192, %v190, %v163
        %v194 = vsel %vm192, %v191, %v165
        %vm195 = vcmask 130048
        %v196 = vsel %vm195, %v193, %v169
        %v197 = vsel %vm195, %v194, %v171
        %vm198 = vcmask 162816
        %v199 = vsel %vm198, %v196, %v175
        %v200 = vsel %vm198, %v197, %v177
        %vm201 = vcmask 195584
        %v202 = vsel %vm201, %v199, %v181
        %v203 = vsel %vm201, %v200, %v183
        %vm204 = vcmask 228352
        %205 = vst.msk [vmem:[%s131] sm:$0xff] %vm204, %v202
        %206 = vst.msk [vmem:[%s131 + $0x8] sm:$0xff] %vm204, %v203
        %s207 = sadd.s32 %s133, 1
        %p208 = scmp.lt.s32.totalorder %s207, 6
        %s209 = scalar_select %p208, %s207, 6
        %s210 = smul.u32 %s209, 2
        %s211 = scalar_lea.vmem [#allocation2], %s210
        %v212 = vld [vmem:[%s211] sm:$0xf]
        %v213 = vld [vmem:[%s211 + $0x10] sm:$0xf]
        %v214 = vld [vmem:[%s211 + $0x20] sm:$0xf]
        %v215 = vld [vmem:[%s211 + $0x30] sm:$0xf]
        %v220 = vcombine.low %v212, %v213
        %v221 = vcombine.low %v214, %v215
        %224 = vrot.lane.b32.xlu0 %v220, 2
        %v225 = vpop.permute.xlu0 %224
        %226 = vrot.lane.b32.xlu0 %v221, 2
        %v227 = vpop.permute.xlu0 %226
        %230 = vrot.lane.b32.xlu0 %v220, 4
        %v231 = vpop.permute.xlu0 %230
        %232 = vrot.lane.b32.xlu0 %v221, 4
        %v233 = vpop.permute.xlu0 %232
        %236 = vrot.lane.b32.xlu0 %v220, 6
        %v237 = vpop.permute.xlu0 %236
        %238 = vrot.lane.b32.xlu0 %v221, 6
        %v239 = vpop.permute.xlu0 %238
        %242 = vrot.lane.b32.xlu0 %v220, 8
        %v243 = vpop.permute.xlu0 %242
        %244 = vrot.lane.b32.xlu0 %v221, 8
        %v245 = vpop.permute.xlu0 %244
        %248 = vrot.lane.b32.xlu0 %v220, 10
        %v249 = vpop.permute.xlu0 %248
        %250 = vrot.lane.b32.xlu0 %v221, 10
        %v251 = vpop.permute.xlu0 %250
        %254 = vrot.lane.b32.xlu0 %v220, 12
        %v255 = vpop.permute.xlu0 %254
        %256 = vrot.lane.b32.xlu0 %v221, 12
        %v257 = vpop.permute.xlu0 %256
        %v260 = vsel %vm186, %v220, %v225
        %v261 = vsel %vm186, %v221, %v227
        %v262 = vsel %vm189, %v260, %v231
        %v263 = vsel %vm189, %v261, %v233
        %v264 = vsel %vm192, %v262, %v237
        %v265 = vsel %vm192, %v263, %v239
        %v266 = vsel %vm195, %v264, %v243
        %v267 = vsel %vm195, %v265, %v245
        %v268 = vsel %vm198, %v266, %v249
        %v269 = vsel %vm198, %v267, %v251
        %v270 = vsel %vm201, %v268, %v255
        %v271 = vsel %vm201, %v269, %v257
        %s272 = scalar_lea.vmem %s131, 16 [#allocation5]
        %273 = vst.msk [vmem:[%s272] sm:$0xff] %vm204, %v270
        %274 = vst.msk [vmem:[%s272 + $0x8] sm:$0xff] %vm204, %v271
        %s275 = sadd.s32 %s133, 2
        %p276 = scmp.lt.s32.totalorder %s275, 6
        %s277 = scalar_select %p276, %s275, 6
        %s278 = smul.u32 %s277, 2
        %s279 = scalar_lea.vmem [#allocation2], %s278
        %v280 = vld [vmem:[%s279] sm:$0xf]
        %v281 = vld [vmem:[%s279 + $0x10] sm:$0xf]
        %v282 = vld [vmem:[%s279 + $0x20] sm:$0xf]
        %v283 = vld [vmem:[%s279 + $0x30] sm:$0xf]
        %v288 = vcombine.low %v280, %v281
        %v289 = vcombine.low %v282, %v283
        %292 = vrot.lane.b32.xlu0 %v288, 2
        %v293 = vpop.permute.xlu0 %292
        %294 = vrot.lane.b32.xlu0 %v289, 2
        %v295 = vpop.permute.xlu0 %294
        %298 = vrot.lane.b32.xlu0 %v288, 4
        %v299 = vpop.permute.xlu0 %298
        %300 = vrot.lane.b32.xlu0 %v289, 4
        %v301 = vpop.permute.xlu0 %300
        %304 = vrot.lane.b32.xlu0 %v288, 6
        %v305 = vpop.permute.xlu0 %304
        %306 = vrot.lane.b32.xlu0 %v289, 6
        %v307 = vpop.permute.xlu0 %306
        %310 = vrot.lane.b32.xlu0 %v288, 8
        %v311 = vpop.permute.xlu0 %310
        %312 = vrot.lane.b32.xlu0 %v289, 8
        %v313 = vpop.permute.xlu0 %312
        %316 = vrot.lane.b32.xlu0 %v288, 10
        %v317 = vpop.permute.xlu0 %316
        %318 = vrot.lane.b32.xlu0 %v289, 10
        %v319 = vpop.permute.xlu0 %318
        %322 = vrot.lane.b32.xlu0 %v288, 12
        %v323 = vpop.permute.xlu0 %322
        %324 = vrot.lane.b32.xlu0 %v289, 12
        %v325 = vpop.permute.xlu0 %324
        %v328 = vsel %vm186, %v288, %v293
        %v329 = vsel %vm186, %v289, %v295
        %v330 = vsel %vm189, %v328, %v299
        %v331 = vsel %vm189, %v329, %v301
        %v332 = vsel %vm192, %v330, %v305
        %v333 = vsel %vm192, %v331, %v307
        %v334 = vsel %vm195, %v332, %v311
        %v335 = vsel %vm195, %v333, %v313
        %v336 = vsel %vm198, %v334, %v317
        %v337 = vsel %vm198, %v335, %v319
        %v338 = vsel %vm201, %v336, %v323
        %v339 = vsel %vm201, %v337, %v325
        %s340 = scalar_lea.vmem %s131, 32 [#allocation5]
        %341 = vst.msk [vmem:[%s340] sm:$0xff] %vm204, %v338
        %342 = vst.msk [vmem:[%s340 + $0x8] sm:$0xff] %vm204, %v339
        %s343 = sadd.s32 %s133, 3
        %p344 = scmp.lt.s32.totalorder %s343, 6
        %s345 = scalar_select %p344, %s343, 6
        %s346 = smul.u32 %s345, 2
        %s347 = scalar_lea.vmem [#allocation2], %s346
        %v348 = vld [vmem:[%s347] sm:$0xf]
        %v349 = vld [vmem:[%s347 + $0x10] sm:$0xf]
        %v350 = vld [vmem:[%s347 + $0x20] sm:$0xf]
        %v351 = vld [vmem:[%s347 + $0x30] sm:$0xf]
        %v356 = vcombine.low %v348, %v349
        %v357 = vcombine.low %v350, %v351
        %360 = vrot.lane.b32.xlu0 %v356, 2
        %v361 = vpop.permute.xlu0 %360
        %362 = vrot.lane.b32.xlu0 %v357, 2
        %v363 = vpop.permute.xlu0 %362
        %366 = vrot.lane.b32.xlu0 %v356, 4
        %v367 = vpop.permute.xlu0 %366
        %368 = vrot.lane.b32.xlu0 %v357, 4
        %v369 = vpop.permute.xlu0 %368
        %372 = vrot.lane.b32.xlu0 %v356, 6
        %v373 = vpop.permute.xlu0 %372
        %374 = vrot.lane.b32.xlu0 %v357, 6
        %v375 = vpop.permute.xlu0 %374
        %378 = vrot.lane.b32.xlu0 %v356, 8
        %v379 = vpop.permute.xlu0 %378
        %380 = vrot.lane.b32.xlu0 %v357, 8
        %v381 = vpop.permute.xlu0 %380
        %384 = vrot.lane.b32.xlu0 %v356, 10
        %v385 = vpop.permute.xlu0 %384
        %386 = vrot.lane.b32.xlu0 %v357, 10
        %v387 = vpop.permute.xlu0 %386
        %390 = vrot.lane.b32.xlu0 %v356, 12
        %v391 = vpop.permute.xlu0 %390
        %392 = vrot.lane.b32.xlu0 %v357, 12
        %v393 = vpop.permute.xlu0 %392
        %v396 = vsel %vm186, %v356, %v361
        %v397 = vsel %vm186, %v357, %v363
        %v398 = vsel %vm189, %v396, %v367
        %v399 = vsel %vm189, %v397, %v369
        %v400 = vsel %vm192, %v398, %v373
        %v401 = vsel %vm192, %v399, %v375
        %v402 = vsel %vm195, %v400, %v379
        %v403 = vsel %vm195, %v401, %v381
        %v404 = vsel %vm198, %v402, %v385
        %v405 = vsel %vm198, %v403, %v387
        %v406 = vsel %vm201, %v404, %v391
        %v407 = vsel %vm201, %v405, %v393
        %s408 = scalar_lea.vmem %s131, 48 [#allocation5]
        %409 = vst.msk [vmem:[%s408] sm:$0xff] %vm204, %v406
        %410 = vst.msk [vmem:[%s408 + $0x8] sm:$0xff] %vm204, %v407
        %s411 = sadd.s32 %s133, 4
        %p412 = scmp.lt.s32.totalorder %s411, 6
        %s413 = scalar_select %p412, %s411, 6
        %s414 = smul.u32 %s413, 2
        %s415 = scalar_lea.vmem [#allocation2], %s414
        %v416 = vld [vmem:[%s415] sm:$0xf]
        %v417 = vld [vmem:[%s415 + $0x10] sm:$0xf]
        %v418 = vld [vmem:[%s415 + $0x20] sm:$0xf]
        %v419 = vld [vmem:[%s415 + $0x30] sm:$0xf]
        %v424 = vcombine.low %v416, %v417
        %v425 = vcombine.low %v418, %v419
        %428 = vrot.lane.b32.xlu0 %v424, 2
        %v429 = vpop.permute.xlu0 %428
        %430 = vrot.lane.b32.xlu0 %v425, 2
        %v431 = vpop.permute.xlu0 %430
        %434 = vrot.lane.b32.xlu0 %v424, 4
        %v435 = vpop.permute.xlu0 %434
        %436 = vrot.lane.b32.xlu0 %v425, 4
        %v437 = vpop.permute.xlu0 %436
        %440 = vrot.lane.b32.xlu0 %v424, 6
        %v441 = vpop.permute.xlu0 %440
        %442 = vrot.lane.b32.xlu0 %v425, 6
        %v443 = vpop.permute.xlu0 %442
        %446 = vrot.lane.b32.xlu0 %v424, 8
        %v447 = vpop.permute.xlu0 %446
        %448 = vrot.lane.b32.xlu0 %v425, 8
        %v449 = vpop.permute.xlu0 %448
        %452 = vrot.lane.b32.xlu0 %v424, 10
        %v453 = vpop.permute.xlu0 %452
        %454 = vrot.lane.b32.xlu0 %v425, 10
        %v455 = vpop.permute.xlu0 %454
        %458 = vrot.lane.b32.xlu0 %v424, 12
        %v459 = vpop.permute.xlu0 %458
        %460 = vrot.lane.b32.xlu0 %v425, 12
        %v461 = vpop.permute.xlu0 %460
        %v464 = vsel %vm186, %v424, %v429
        %v465 = vsel %vm186, %v425, %v431
        %v466 = vsel %vm189, %v464, %v435
        %v467 = vsel %vm189, %v465, %v437
        %v468 = vsel %vm192, %v466, %v441
        %v469 = vsel %vm192, %v467, %v443
        %v470 = vsel %vm195, %v468, %v447
        %v471 = vsel %vm195, %v469, %v449
        %v472 = vsel %vm198, %v470, %v453
        %v473 = vsel %vm198, %v471, %v455
        %v474 = vsel %vm201, %v472, %v459
        %v475 = vsel %vm201, %v473, %v461
        %s476 = scalar_lea.vmem %s131, 64 [#allocation5]
        %477 = vst.msk [vmem:[%s476] sm:$0xff] %vm204, %v474
        %478 = vst.msk [vmem:[%s476 + $0x8] sm:$0xff] %vm204, %v475
        %s479 = sadd.s32 %s133, 5
        %p480 = scmp.lt.s32.totalorder %s479, 6
        %s481 = scalar_select %p480, %s479, 6
        %s482 = smul.u32 %s481, 2
        %s483 = scalar_lea.vmem [#allocation2], %s482
        %v484 = vld [vmem:[%s483] sm:$0xf]
        %v485 = vld [vmem:[%s483 + $0x10] sm:$0xf]
        %v486 = vld [vmem:[%s483 + $0x20] sm:$0xf]
        %v487 = vld [vmem:[%s483 + $0x30] sm:$0xf]
        %v492 = vcombine.low %v484, %v485
        %v493 = vcombine.low %v486, %v487
        %496 = vrot.lane.b32.xlu0 %v492, 2
        %v497 = vpop.permute.xlu0 %496
        %498 = vrot.lane.b32.xlu0 %v493, 2
        %v499 = vpop.permute.xlu0 %498
        %502 = vrot.lane.b32.xlu0 %v492, 4
        %v503 = vpop.permute.xlu0 %502
        %504 = vrot.lane.b32.xlu0 %v493, 4
        %v505 = vpop.permute.xlu0 %504
        %508 = vrot.lane.b32.xlu0 %v492, 6
        %v509 = vpop.permute.xlu0 %508
        %510 = vrot.lane.b32.xlu0 %v493, 6
        %v511 = vpop.permute.xlu0 %510
        %514 = vrot.lane.b32.xlu0 %v492, 8
        %v515 = vpop.permute.xlu0 %514
        %516 = vrot.lane.b32.xlu0 %v493, 8
        %v517 = vpop.permute.xlu0 %516
        %520 = vrot.lane.b32.xlu0 %v492, 10
        %v521 = vpop.permute.xlu0 %520
        %522 = vrot.lane.b32.xlu0 %v493, 10
        %v523 = vpop.permute.xlu0 %522
        %526 = vrot.lane.b32.xlu0 %v492, 12
        %v527 = vpop.permute.xlu0 %526
        %528 = vrot.lane.b32.xlu0 %v493, 12
        %v529 = vpop.permute.xlu0 %528
        %v532 = vsel %vm186, %v492, %v497
        %v533 = vsel %vm186, %v493, %v499
        %v534 = vsel %vm189, %v532, %v503
        %v535 = vsel %vm189, %v533, %v505
        %v536 = vsel %vm192, %v534, %v509
        %v537 = vsel %vm192, %v535, %v511
        %v538 = vsel %vm195, %v536, %v515
        %v539 = vsel %vm195, %v537, %v517
        %v540 = vsel %vm198, %v538, %v521
        %v541 = vsel %vm198, %v539, %v523
        %v542 = vsel %vm201, %v540, %v527
        %v543 = vsel %vm201, %v541, %v529
        %s544 = scalar_lea.vmem %s131, 80 [#allocation5]
        %545 = vst.msk [vmem:[%s544] sm:$0xff] %vm204, %v542
        %546 = vst.msk [vmem:[%s544 + $0x8] sm:$0xff] %vm204, %v543
        %s547 = sadd.s32 %s133, 6
        %p548 = scmp.lt.s32.totalorder %s547, 6
        %s549 = scalar_select %p548, %s547, 6
        %s550 = smul.u32 %s549, 2
        %s551 = scalar_lea.vmem [#allocation2], %s550
        %v552 = vld [vmem:[%s551] sm:$0xf]
        %v553 = vld [vmem:[%s551 + $0x10] sm:$0xf]
        %v554 = vld [vmem:[%s551 + $0x20] sm:$0xf]
        %v555 = vld [vmem:[%s551 + $0x30] sm:$0xf]
        %v560 = vcombine.low %v552, %v553
        %v561 = vcombine.low %v554, %v555
        %564 = vrot.lane.b32.xlu0 %v560, 2
        %v565 = vpop.permute.xlu0 %564
        %566 = vrot.lane.b32.xlu0 %v561, 2
        %v567 = vpop.permute.xlu0 %566
        %570 = vrot.lane.b32.xlu0 %v560, 4
        %v571 = vpop.permute.xlu0 %570
        %572 = vrot.lane.b32.xlu0 %v561, 4
        %v573 = vpop.permute.xlu0 %572
        %576 = vrot.lane.b32.xlu0 %v560, 6
        %v577 = vpop.permute.xlu0 %576
        %578 = vrot.lane.b32.xlu0 %v561, 6
        %v579 = vpop.permute.xlu0 %578
        %582 = vrot.lane.b32.xlu0 %v560, 8
        %v583 = vpop.permute.xlu0 %582
        %584 = vrot.lane.b32.xlu0 %v561, 8
        %v585 = vpop.permute.xlu0 %584
        %588 = vrot.lane.b32.xlu0 %v560, 10
        %v589 = vpop.permute.xlu0 %588
        %590 = vrot.lane.b32.xlu0 %v561, 10
        %v591 = vpop.permute.xlu0 %590
        %594 = vrot.lane.b32.xlu0 %v560, 12
        %v595 = vpop.permute.xlu0 %594
        %596 = vrot.lane.b32.xlu0 %v561, 12
        %v597 = vpop.permute.xlu0 %596
        %v600 = vsel %vm186, %v560, %v565
        %v601 = vsel %vm186, %v561, %v567
        %v602 = vsel %vm189, %v600, %v571
        %v603 = vsel %vm189, %v601, %v573
        %v604 = vsel %vm192, %v602, %v577
        %v605 = vsel %vm192, %v603, %v579
        %v606 = vsel %vm195, %v604, %v583
        %v607 = vsel %vm195, %v605, %v585
        %v608 = vsel %vm198, %v606, %v589
        %v609 = vsel %vm198, %v607, %v591
        %v610 = vsel %vm201, %v608, %v595
        %v611 = vsel %vm201, %v609, %v597
        %s612 = scalar_lea.vmem %s131, 96 [#allocation5]
        %613 = vst.msk [vmem:[%s612] sm:$0xff] %vm204, %v610
        %614 = vst.msk [vmem:[%s612 + $0x8] sm:$0xff] %vm204, %v611
        %s615 = sand.u32 %s64, 1
        %s616 = scalar_lea.sflag [#allocation4], %s615
        %s617 = sand.u32 %s64, 1
        %s618 = smul.addr %s617, 112
        %s619 = scalar_lea.vmem [#allocation5], %s618
        // Predicated region
        $region29: #{tpu_custom_call.1} parent=23 // pred_check
          %p620 = pneg %p74
        $region30: #{tpu_custom_call.1} parent=23 // pred_check_branch
          %622 = sbr.rel (%p620) target = $region32
        $region31: #{tpu_custom_call.1} parent=23 // pred_region
          %s623 = smul.u32 7, %s21
          %s625 = ssub.s32 1792, 1792
          %626 = vsyncadd %s616, %s625
          %s627 = smul.addr %s623, 2
          %s628 = smul.addr %s20, 14
          %s629 = sadd.s32 %s627, %s628
          %s630 = smul.addr %s629, 128
          %s631 = scalar_lea.hbm %s1, %s630
          %s632 = sshll.u32 %s619, 4
          %s633 = int_to_ptr.vmem [resolvable:$true] %s632
          %638 = dma.vmem_to_hbm [thread:$0]  %s633, 1792, %s631, %s616, 128, 128, 8
        $region32: #{tpu_custom_call.1} parent=23 // pred_fallthru
          _
      $region24: #{tpu_custom_call.1} parent=5 // pred_fallthru
        _
      %p639 = scmp.le.s32.totalorder 2, %s11
      // Predicated region
      $region33: #{tpu_custom_call.1} parent=5 // pred_check
        %p640 = pneg %p639
      $region34: #{tpu_custom_call.1} parent=5 // pred_check_branch
        %642 = sbr.rel (%p640) target = $region36
      $region35: #{tpu_custom_call.1} parent=5 // pred_region
        %s643 = ssub.s32 %s11, 2
        // Predicated region
        $region37: #{tpu_custom_call.1} parent=35 // pred_check
          %p644 = pneg %p80
        $region38: #{tpu_custom_call.1} parent=35 // pred_check_branch
          %646 = sbr.rel (%p644) target = $region40
        $region39: #{tpu_custom_call.1} parent=35 // pred_region
          %s647 = sand.u32 %s65, 1
          %s648 = scalar_lea.sflag [#allocation4], %s647
          %s649 = sand.u32 %s65, 1
          %s650 = smul.addr %s649, 112
          %s651 = scalar_lea.vmem [#allocation5], %s650
          %652 = dma.done %s648, 1792
        $region40: #{tpu_custom_call.1} parent=35 // pred_fallthru
          _
      $region36: #{tpu_custom_call.1} parent=5 // pred_fallthru
        _
    $region6: #{tpu_custom_call.1} parent=1 // loop_footer
      %s15 = sadd.s32 1, %s11
    $region7: #{tpu_custom_call.1} parent=1 // loop_footer_branch
      %10 = sbr.rel target = $region3
    $region8: #{tpu_custom_call.1} parent=1 // loop_exit
      _
    %653 = vsyncpa [#allocation3], 1
    %s654 = scalar_lea.sflag [#allocation3], 1
    %655 = vsyncpa %s654, 1
    %656 = vsyncpa [#allocation4], 1
    %s657 = scalar_lea.sflag [#allocation4], 1
    %658 = vsyncpa %s657, 1

// kernel: tpu_custom_call.1
$region0: #{tpu_custom_call.1}
  #allocation0 [shape = 'u32[]', space=smem, size = 0x4, offset = 0x4, fixed_abs, tag = 'smem constant byte address 0x4 - core index']
  #allocation1 [shape = 'u32[144,128]{1,0:T(1,128)}', space=vmem, size = 0x12000, scoped, tag = 'internal scratch']
  %s0 = inlined_call_operand.hbm [shape: f32[2,4,16,16], index: 0, kind: input, shape index: {}]
  %s1 = inlined_call_operand.hbm [shape: f32[2,7,16,28], index: 1, kind: output, shape index: {}]
  %s2 = sld [smem:[#allocation0]]
  $region41: #{tpu_custom_call.1} parent=0
    _
  %s4 = ssub.s32 1, %s2
  %s5 = scalar_select 0, %s4, %s2
  $region1: #{tpu_custom_call.1} parent=0
    #allocation2 [shape = 'u8[65536]{0}', space=vmem, size = 0x10000, scoped, tag = 'input window, operand 0']
    #allocation3 [shape = 's32[2]{0}', space=sflag, size = 0x8, scoped, tag = 'scoped memory for tpu_custom_call.1']
    #allocation4 [shape = 's32[2]{0}', space=sflag, size = 0x8, scoped, tag = 'scoped memory for tpu_custom_call.1']
    #allocation5 [shape = 'u8[114688]{0}', space=vmem, size = 0x1c000, scoped, tag = 'output window, operand 0']
    %6 = vsyncpa [#allocation3], 0
    %s7 = scalar_lea.sflag [#allocation3], 1
    %8 = vsyncpa %s7, 0
    %9 = vsyncpa [#allocation4], 0
    %s10 = scalar_lea.sflag [#allocation4], 1
    %11 = vsyncpa %s10, 0
    loop: start=0, step=1, limit=4
    $region2: #{tpu_custom_call.1} parent=1 // loop_pre_header
      _
    $region3: #{tpu_custom_call.1} parent=1 // loop_header
      %s13 = sphi 0, %s17
      %p14 = scmp.ge.s32.totalorder %s13, 4
      %s20 = sphi 0, %s32
      %s21 = sphi 0, %s28
      %s22 = sphi 0, %s20
      %s23 = sphi 0, %s21
      %s24 = sphi 0, %s22
      %s25 = sphi 0, %s23
      %s35 = sphi 0, %s37
      %s38 = sphi 0, %s35
      %s39 = sphi 0, %s38
      %s55 = sphi 0, %s39
      %s63 = sphi 0, %s65
      %s66 = sphi 0, %s63
      %s67 = sphi 0, %s66
      %s83 = sphi 0, %s67
    $region4: #{tpu_custom_call.1} parent=1 // loop_header_branch
      %16 = sbr.rel (%p14) target = $region8
    $region5: #{tpu_custom_call.1} parent=1 // loop_body
      %s18 = ssub.s32 %s13, 1
      %s19 = ssub.s32 %s13, 2
      %s26 = sadd.s32 1, %s21
      %p27 = scmp.ge.s32.totalorder %s26, 1
      %s28 = scalar_select %p27, 0, %s26
      %s29 = sadd.s32 1, %s20
      %s30 = scalar_select %p27, %s29, %s20
      %p31 = scmp.ge.s32.totalorder %s30, 2
      %s32 = scalar_select %p31, 0, %s30
      %s33 = ssub.s32 %s20, %s32
      %p34 = scmp.eq.s32.totalorder %s33, 0
      %s36 = sadd.s32 %s35, 1
      %s37 = scalar_select %p34, %s35, %s36
      %p40 = pneg %p34
      %p41 = scmp.eq.s32.totalorder %s13, 1
      %p42 = por %p40, %p41
      %p43 = scmp.ne.s32.totalorder %s35, %s38
      %p44 = scmp.eq.s32.totalorder %s13, 0
      %p45 = por %p43, %p44
      %p46 = scmp.ne.s32.totalorder %s35, %s38
      %p47 = scmp.eq.s32.totalorder %s18, 1
      %p48 = por %p46, %p47
      %p49 = scmp.ne.s32.totalorder %s38, %s39
      %p50 = scmp.eq.s32.totalorder %s18, 0
      %p51 = por %p49, %p50
      %p52 = scmp.ne.s32.totalorder %s38, %s39
      %p53 = scmp.eq.s32.totalorder %s19, 1
      %p54 = por %p52, %p53
      %p56 = scmp.ne.s32.totalorder %s39, %s55
      %p57 = scmp.eq.s32.totalorder %s19, 0
      %p58 = por %p56, %p57
      %s59 = ssub.s32 %s20, %s32
      %s60 = ssub.s32 %s21, %s28
      %s61 = sor.u32 %s59, %s60
      %p62 = scmp.eq.s32.totalorder %s61, 0
      %s64 = sadd.s32 %s63, 1
      %s65 = scalar_select %p62, %s63, %s64
      %p68 = pneg %p62
      %p69 = scmp.eq.s32.totalorder %s13, 1
      %p70 = por %p68, %p69
      %p71 = scmp.ne.s32.totalorder %s63, %s66
      %p72 = scmp.eq.s32.totalorder %s13, 0
      %p73 = por %p71, %p72
      %p74 = scmp.ne.s32.totalorder %s63, %s66
      %p75 = scmp.eq.s32.totalorder %s18, 1
      %p76 = por %p74, %p75
      %p77 = scmp.ne.s32.totalorder %s66, %s67
      %p78 = scmp.eq.s32.totalorder %s18, 0
      %p79 = por %p77, %p78
      %p80 = scmp.ne.s32.totalorder %s66, %s67
      %p81 = scmp.eq.s32.totalorder %s19, 1
      %p82 = por %p80, %p81
      %p84 = scmp.ne.s32.totalorder %s67, %s83
      %p85 = scmp.eq.s32.totalorder %s19, 0
      %p86 = por %p84, %p85
      %p87 = scmp.le.s32.totalorder 1, %s13
      %p88 = scmp.lt.s32.totalorder %s13, 3
      %p89 = pnand %p87, %p88
      %p90 = pneg %p89
      // Predicated region
      $region9: #{tpu_custom_call.1} parent=5 // pred_check
        _
      $region10: #{tpu_custom_call.1} parent=5 // pred_check_branch
        %92 = sbr.rel (%p89) target = $region12
      $region11: #{tpu_custom_call.1} parent=5 // pred_region
        %s93 = ssub.s32 %s13, 1
      $region12: #{tpu_custom_call.1} parent=5 // pred_fallthru
        _
      %p94 = scmp.lt.s32.totalorder %s13, 2
      // Predicated region
      $region13: #{tpu_custom_call.1} parent=5 // pred_check
        %p95 = pneg %p94
      $region14: #{tpu_custom_call.1} parent=5 // pred_check_branch
        %97 = sbr.rel (%p95) target = $region16
      $region15: #{tpu_custom_call.1} parent=5 // pred_region
        // Predicated region
        $region17: #{tpu_custom_call.1} parent=15 // pred_check
          %p98 = pneg %p45
        $region18: #{tpu_custom_call.1} parent=15 // pred_check_branch
          %100 = sbr.rel (%p98) target = $region20
        $region19: #{tpu_custom_call.1} parent=15 // pred_region
          %s101 = sand.u32 %s35, 1
          %s102 = scalar_lea.sflag [#allocation3], %s101
          %s103 = sand.u32 %s35, 1
          %s104 = smul.addr %s103, 64
          %s105 = scalar_lea.vmem [#allocation2], %s104
          %s107 = ssub.s32 1024, 1024
          %108 = vsyncadd %s102, %s107
          %s109 = smul.addr %s20, 8
          %s110 = smul.addr %s109, 128
          %s111 = scalar_lea.hbm %s0, %s110
          %s112 = sshll.u32 %s105, 4
          %s113 = int_to_ptr.vmem [resolvable:$true] %s112
          %118 = dma.hbm_to_vmem [thread:$0]  %s111, 1024, %s113, %s102, 128, 128, 8
        $region20: #{tpu_custom_call.1} parent=15 // pred_fallthru
          _
      $region16: #{tpu_custom_call.1} parent=5 // pred_fallthru
        _
      %p119 = scmp.le.s32.totalorder 1, %s13
      %p120 = scmp.lt.s32.totalorder %s13, 3
      %p121 = pnand %p119, %p120
      %p122 = pneg %p121
      // Predicated region
      $region21: #{tpu_custom_call.1} parent=5 // pred_check
        _
      $region22: #{tpu_custom_call.1} parent=5 // pred_check_branch
        %124 = sbr.rel (%p121) target = $region24
      $region23: #{tpu_custom_call.1} parent=5 // pred_region
        %s125 = ssub.s32 %s13, 1
        %s126 = sand.u32 %s38, 1
        %s127 = scalar_lea.sflag [#allocation3], %s126
        %s128 = sand.u32 %s38, 1
        %s129 = smul.addr %s128, 64
        %s130 = scalar_lea.vmem [#allocation2], %s129
        // Predicated region
        $region25: #{tpu_custom_call.1} parent=23 // pred_check
          %p131 = pneg %p51
        $region26: #{tpu_custom_call.1} parent=23 // pred_check_branch
          %133 = sbr.rel (%p131) target = $region28
        $region27: #{tpu_custom_call.1} parent=23 // pred_region
          %134 = dma.done %s127, 1024
        $region28: #{tpu_custom_call.1} parent=23 // pred_fallthru
          _
        %s135 = sand.u32 %s38, 1
        %s136 = scalar_lea.sflag [#allocation3], %s135
        %s137 = sand.u32 %s38, 1
        %s138 = smul.addr %s137, 64
        %s139 = scalar_lea.vmem [#allocation2], %s138
        %p140 = pneg %p51
        %p141 = pneg %p48
        %p142 = pneg %p79
        %p143 = pneg %p76
        %s144 = sand.u32 %s66, 1
        %s145 = scalar_lea.sflag [#allocation4], %s144
        %s146 = sand.u32 %s66, 1
        %s147 = smul.addr %s146, 112
        %s148 = scalar_lea.vmem [#allocation5], %s147
        %s149 = smul.u32 7, %s23
        %s150 = smul.u32 %s23, 7
        %p151 = scmp.lt.s32.totalorder %s150, 6
        %s152 = scalar_select %p151, %s150, 6
        %s153 = smul.u32 %s152, 2
        %s154 = scalar_lea.vmem %s130, %s153 [#allocation2]
        %v155 = vld [vmem:[%s154] sm:$0xf]
        %v156 = vld [vmem:[%s154 + $0x10] sm:$0xf]
        %v157 = vld [vmem:[%s154 + $0x20] sm:$0xf]
        %v158 = vld [vmem:[%s154 + $0x30] sm:$0xf]
        %v163 = vcombine.low %v155, %v156
        %v164 = vcombine.low %v157, %v158
        %167 = vrot.lane.b32.xlu0 %v163, 2
        %v168 = vpop.permute.xlu0 %167
        %169 = vrot.lane.b32.xlu0 %v164, 2
        %v170 = vpop.permute.xlu0 %169
        %173 = vrot.lane.b32.xlu0 %v163, 4
        %v174 = vpop.permute.xlu0 %173
        %175 = vrot.lane.b32.xlu0 %v164, 4
        %v176 = vpop.permute.xlu0 %175
        %179 = vrot.lane.b32.xlu0 %v163, 6
        %v180 = vpop.permute.xlu0 %179
        %181 = vrot.lane.b32.xlu0 %v164, 6
        %v182 = vpop.permute.xlu0 %181
        %185 = vrot.lane.b32.xlu0 %v163, 8
        %v186 = vpop.permute.xlu0 %185
        %187 = vrot.lane.b32.xlu0 %v164, 8
        %v188 = vpop.permute.xlu0 %187
        %191 = vrot.lane.b32.xlu0 %v163, 10
        %v192 = vpop.permute.xlu0 %191
        %193 = vrot.lane.b32.xlu0 %v164, 10
        %v194 = vpop.permute.xlu0 %193
        %197 = vrot.lane.b32.xlu0 %v163, 12
        %v198 = vpop.permute.xlu0 %197
        %199 = vrot.lane.b32.xlu0 %v164, 12
        %v200 = vpop.permute.xlu0 %199
        %vm203 = vcmask 31744
        %v204 = vsel %vm203, %v163, %v168
        %v205 = vsel %vm203, %v164, %v170
        %vm206 = vcmask 64512
        %v207 = vsel %vm206, %v204, %v174
        %v208 = vsel %vm206, %v205, %v176
        %vm209 = vcmask 97280
        %v210 = vsel %vm209, %v207, %v180
        %v211 = vsel %vm209, %v208, %v182
        %vm212 = vcmask 130048
        %v213 = vsel %vm212, %v210, %v186
        %v214 = vsel %vm212, %v211, %v188
        %vm215 = vcmask 162816
        %v216 = vsel %vm215, %v213, %v192
        %v217 = vsel %vm215, %v214, %v194
        %vm218 = vcmask 195584
        %v219 = vsel %vm218, %v216, %v198
        %v220 = vsel %vm218, %v217, %v200
        %vm221 = vcmask 228352
        %222 = vst.msk [vmem:[%s148] sm:$0xff] %vm221, %v219
        %223 = vst.msk [vmem:[%s148 + $0x8] sm:$0xff] %vm221, %v220
        %s224 = sadd.s32 %s150, 1
        %p225 = scmp.lt.s32.totalorder %s224, 6
        %s226 = scalar_select %p225, %s224, 6
        %s227 = smul.u32 %s226, 2
        %s228 = scalar_lea.vmem %s130, %s227 [#allocation2]
        %v229 = vld [vmem:[%s228] sm:$0xf]
        %v230 = vld [vmem:[%s228 + $0x10] sm:$0xf]
        %v231 = vld [vmem:[%s228 + $0x20] sm:$0xf]
        %v232 = vld [vmem:[%s228 + $0x30] sm:$0xf]
        %v237 = vcombine.low %v229, %v230
        %v238 = vcombine.low %v231, %v232
        %241 = vrot.lane.b32.xlu0 %v237, 2
        %v242 = vpop.permute.xlu0 %241
        %243 = vrot.lane.b32.xlu0 %v238, 2
        %v244 = vpop.permute.xlu0 %243
        %247 = vrot.lane.b32.xlu0 %v237, 4
        %v248 = vpop.permute.xlu0 %247
        %249 = vrot.lane.b32.xlu0 %v238, 4
        %v250 = vpop.permute.xlu0 %249
        %253 = vrot.lane.b32.xlu0 %v237, 6
        %v254 = vpop.permute.xlu0 %253
        %255 = vrot.lane.b32.xlu0 %v238, 6
        %v256 = vpop.permute.xlu0 %255
        %259 = vrot.lane.b32.xlu0 %v237, 8
        %v260 = vpop.permute.xlu0 %259
        %261 = vrot.lane.b32.xlu0 %v238, 8
        %v262 = vpop.permute.xlu0 %261
        %265 = vrot.lane.b32.xlu0 %v237, 10
        %v266 = vpop.permute.xlu0 %265
        %267 = vrot.lane.b32.xlu0 %v238, 10
        %v268 = vpop.permute.xlu0 %267
        %271 = vrot.lane.b32.xlu0 %v237, 12
        %v272 = vpop.permute.xlu0 %271
        %273 = vrot.lane.b32.xlu0 %v238, 12
        %v274 = vpop.permute.xlu0 %273
        %v277 = vsel %vm203, %v237, %v242
        %v278 = vsel %vm203, %v238, %v244
        %v279 = vsel %vm206, %v277, %v248
        %v280 = vsel %vm206, %v278, %v250
        %v281 = vsel %vm209, %v279, %v254
        %v282 = vsel %vm209, %v280, %v256
        %v283 = vsel %vm212, %v281, %v260
        %v284 = vsel %vm212, %v282, %v262
        %v285 = vsel %vm215, %v283, %v266
        %v286 = vsel %vm215, %v284, %v268
        %v287 = vsel %vm218, %v285, %v272
        %v288 = vsel %vm218, %v286, %v274
        %s289 = scalar_lea.vmem %s148, 16 [#allocation5]
        %290 = vst.msk [vmem:[%s289] sm:$0xff] %vm221, %v287
        %291 = vst.msk [vmem:[%s289 + $0x8] sm:$0xff] %vm221, %v288
        %s292 = sadd.s32 %s150, 2
        %p293 = scmp.lt.s32.totalorder %s292, 6
        %s294 = scalar_select %p293, %s292, 6
        %s295 = smul.u32 %s294, 2
        %s296 = scalar_lea.vmem %s130, %s295 [#allocation2]
        %v297 = vld [vmem:[%s296] sm:$0xf]
        %v298 = vld [vmem:[%s296 + $0x10] sm:$0xf]
        %v299 = vld [vmem:[%s296 + $0x20] sm:$0xf]
        %v300 = vld [vmem:[%s296 + $0x30] sm:$0xf]
        %v305 = vcombine.low %v297, %v298
        %v306 = vcombine.low %v299, %v300
        %309 = vrot.lane.b32.xlu0 %v305, 2
        %v310 = vpop.permute.xlu0 %309
        %311 = vrot.lane.b32.xlu0 %v306, 2
        %v312 = vpop.permute.xlu0 %311
        %315 = vrot.lane.b32.xlu0 %v305, 4
        %v316 = vpop.permute.xlu0 %315
        %317 = vrot.lane.b32.xlu0 %v306, 4
        %v318 = vpop.permute.xlu0 %317
        %321 = vrot.lane.b32.xlu0 %v305, 6
        %v322 = vpop.permute.xlu0 %321
        %323 = vrot.lane.b32.xlu0 %v306, 6
        %v324 = vpop.permute.xlu0 %323
        %327 = vrot.lane.b32.xlu0 %v305, 8
        %v328 = vpop.permute.xlu0 %327
        %329 = vrot.lane.b32.xlu0 %v306, 8
        %v330 = vpop.permute.xlu0 %329
        %333 = vrot.lane.b32.xlu0 %v305, 10
        %v334 = vpop.permute.xlu0 %333
        %335 = vrot.lane.b32.xlu0 %v306, 10
        %v336 = vpop.permute.xlu0 %335
        %339 = vrot.lane.b32.xlu0 %v305, 12
        %v340 = vpop.permute.xlu0 %339
        %341 = vrot.lane.b32.xlu0 %v306, 12
        %v342 = vpop.permute.xlu0 %341
        %v345 = vsel %vm203, %v305, %v310
        %v346 = vsel %vm203, %v306, %v312
        %v347 = vsel %vm206, %v345, %v316
        %v348 = vsel %vm206, %v346, %v318
        %v349 = vsel %vm209, %v347, %v322
        %v350 = vsel %vm209, %v348, %v324
        %v351 = vsel %vm212, %v349, %v328
        %v352 = vsel %vm212, %v350, %v330
        %v353 = vsel %vm215, %v351, %v334
        %v354 = vsel %vm215, %v352, %v336
        %v355 = vsel %vm218, %v353, %v340
        %v356 = vsel %vm218, %v354, %v342
        %s357 = scalar_lea.vmem %s148, 32 [#allocation5]
        %358 = vst.msk [vmem:[%s357] sm:$0xff] %vm221, %v355
        %359 = vst.msk [vmem:[%s357 + $0x8] sm:$0xff] %vm221, %v356
        %s360 = sadd.s32 %s150, 3
        %p361 = scmp.lt.s32.totalorder %s360, 6
        %s362 = scalar_select %p361, %s360, 6
        %s363 = smul.u32 %s362, 2
        %s364 = scalar_lea.vmem %s130, %s363 [#allocation2]
        %v365 = vld [vmem:[%s364] sm:$0xf]
        %v366 = vld [vmem:[%s364 + $0x10] sm:$0xf]
        %v367 = vld [vmem:[%s364 + $0x20] sm:$0xf]
        %v368 = vld [vmem:[%s364 + $0x30] sm:$0xf]
        %v373 = vcombine.low %v365, %v366
        %v374 = vcombine.low %v367, %v368
        %377 = vrot.lane.b32.xlu0 %v373, 2
        %v378 = vpop.permute.xlu0 %377
        %379 = vrot.lane.b32.xlu0 %v374, 2
        %v380 = vpop.permute.xlu0 %379
        %383 = vrot.lane.b32.xlu0 %v373, 4
        %v384 = vpop.permute.xlu0 %383
        %385 = vrot.lane.b32.xlu0 %v374, 4
        %v386 = vpop.permute.xlu0 %385
        %389 = vrot.lane.b32.xlu0 %v373, 6
        %v390 = vpop.permute.xlu0 %389
        %391 = vrot.lane.b32.xlu0 %v374, 6
        %v392 = vpop.permute.xlu0 %391
        %395 = vrot.lane.b32.xlu0 %v373, 8
        %v396 = vpop.permute.xlu0 %395
        %397 = vrot.lane.b32.xlu0 %v374, 8
        %v398 = vpop.permute.xlu0 %397
        %401 = vrot.lane.b32.xlu0 %v373, 10
        %v402 = vpop.permute.xlu0 %401
        %403 = vrot.lane.b32.xlu0 %v374, 10
        %v404 = vpop.permute.xlu0 %403
        %407 = vrot.lane.b32.xlu0 %v373, 12
        %v408 = vpop.permute.xlu0 %407
        %409 = vrot.lane.b32.xlu0 %v374, 12
        %v410 = vpop.permute.xlu0 %409
        %v413 = vsel %vm203, %v373, %v378
        %v414 = vsel %vm203, %v374, %v380
        %v415 = vsel %vm206, %v413, %v384
        %v416 = vsel %vm206, %v414, %v386
        %v417 = vsel %vm209, %v415, %v390
        %v418 = vsel %vm209, %v416, %v392
        %v419 = vsel %vm212, %v417, %v396
        %v420 = vsel %vm212, %v418, %v398
        %v421 = vsel %vm215, %v419, %v402
        %v422 = vsel %vm215, %v420, %v404
        %v423 = vsel %vm218, %v421, %v408
        %v424 = vsel %vm218, %v422, %v410
        %s425 = scalar_lea.vmem %s148, 48 [#allocation5]
        %426 = vst.msk [vmem:[%s425] sm:$0xff] %vm221, %v423
        %427 = vst.msk [vmem:[%s425 + $0x8] sm:$0xff] %vm221, %v424
        %s428 = sadd.s32 %s150, 4
        %p429 = scmp.lt.s32.totalorder %s428, 6
        %s430 = scalar_select %p429, %s428, 6
        %s431 = smul.u32 %s430, 2
        %s432 = scalar_lea.vmem %s130, %s431 [#allocation2]
        %v433 = vld [vmem:[%s432] sm:$0xf]
        %v434 = vld [vmem:[%s432 + $0x10] sm:$0xf]
        %v435 = vld [vmem:[%s432 + $0x20] sm:$0xf]
        %v436 = vld [vmem:[%s432 + $0x30] sm:$0xf]
        %v441 = vcombine.low %v433, %v434
        %v442 = vcombine.low %v435, %v436
        %445 = vrot.lane.b32.xlu0 %v441, 2
        %v446 = vpop.permute.xlu0 %445
        %447 = vrot.lane.b32.xlu0 %v442, 2
        %v448 = vpop.permute.xlu0 %447
        %451 = vrot.lane.b32.xlu0 %v441, 4
        %v452 = vpop.permute.xlu0 %451
        %453 = vrot.lane.b32.xlu0 %v442, 4
        %v454 = vpop.permute.xlu0 %453
        %457 = vrot.lane.b32.xlu0 %v441, 6
        %v458 = vpop.permute.xlu0 %457
        %459 = vrot.lane.b32.xlu0 %v442, 6
        %v460 = vpop.permute.xlu0 %459
        %463 = vrot.lane.b32.xlu0 %v441, 8
        %v464 = vpop.permute.xlu0 %463
        %465 = vrot.lane.b32.xlu0 %v442, 8
        %v466 = vpop.permute.xlu0 %465
        %469 = vrot.lane.b32.xlu0 %v441, 10
        %v470 = vpop.permute.xlu0 %469
        %471 = vrot.lane.b32.xlu0 %v442, 10
        %v472 = vpop.permute.xlu0 %471
        %475 = vrot.lane.b32.xlu0 %v441, 12
        %v476 = vpop.permute.xlu0 %475
        %477 = vrot.lane.b32.xlu0 %v442, 12
        %v478 = vpop.permute.xlu0 %477
        %v481 = vsel %vm203, %v441, %v446
        %v482 = vsel %vm203, %v442, %v448
        %v483 = vsel %vm206, %v481, %v452
        %v484 = vsel %vm206, %v482, %v454
        %v485 = vsel %vm209, %v483, %v458
        %v486 = vsel %vm209, %v484, %v460
        %v487 = vsel %vm212, %v485, %v464
        %v488 = vsel %vm212, %v486, %v466
        %v489 = vsel %vm215, %v487, %v470
        %v490 = vsel %vm215, %v488, %v472
        %v491 = vsel %vm218, %v489, %v476
        %v492 = vsel %vm218, %v490, %v478
        %s493 = scalar_lea.vmem %s148, 64 [#allocation5]
        %494 = vst.msk [vmem:[%s493] sm:$0xff] %vm221, %v491
        %495 = vst.msk [vmem:[%s493 + $0x8] sm:$0xff] %vm221, %v492
        %s496 = sadd.s32 %s150, 5
        %p497 = scmp.lt.s32.totalorder %s496, 6
        %s498 = scalar_select %p497, %s496, 6
        %s499 = smul.u32 %s498, 2
        %s500 = scalar_lea.vmem %s130, %s499 [#allocation2]
        %v501 = vld [vmem:[%s500] sm:$0xf]
        %v502 = vld [vmem:[%s500 + $0x10] sm:$0xf]
        %v503 = vld [vmem:[%s500 + $0x20] sm:$0xf]
        %v504 = vld [vmem:[%s500 + $0x30] sm:$0xf]
        %v509 = vcombine.low %v501, %v502
        %v510 = vcombine.low %v503, %v504
        %513 = vrot.lane.b32.xlu0 %v509, 2
        %v514 = vpop.permute.xlu0 %513
        %515 = vrot.lane.b32.xlu0 %v510, 2
        %v516 = vpop.permute.xlu0 %515
        %519 = vrot.lane.b32.xlu0 %v509, 4
        %v520 = vpop.permute.xlu0 %519
        %521 = vrot.lane.b32.xlu0 %v510, 4
        %v522 = vpop.permute.xlu0 %521
        %525 = vrot.lane.b32.xlu0 %v509, 6
        %v526 = vpop.permute.xlu0 %525
        %527 = vrot.lane.b32.xlu0 %v510, 6
        %v528 = vpop.permute.xlu0 %527
        %531 = vrot.lane.b32.xlu0 %v509, 8
        %v532 = vpop.permute.xlu0 %531
        %533 = vrot.lane.b32.xlu0 %v510, 8
        %v534 = vpop.permute.xlu0 %533
        %537 = vrot.lane.b32.xlu0 %v509, 10
        %v538 = vpop.permute.xlu0 %537
        %539 = vrot.lane.b32.xlu0 %v510, 10
        %v540 = vpop.permute.xlu0 %539
        %543 = vrot.lane.b32.xlu0 %v509, 12
        %v544 = vpop.permute.xlu0 %543
        %545 = vrot.lane.b32.xlu0 %v510, 12
        %v546 = vpop.permute.xlu0 %545
        %v549 = vsel %vm203, %v509, %v514
        %v550 = vsel %vm203, %v510, %v516
        %v551 = vsel %vm206, %v549, %v520
        %v552 = vsel %vm206, %v550, %v522
        %v553 = vsel %vm209, %v551, %v526
        %v554 = vsel %vm209, %v552, %v528
        %v555 = vsel %vm212, %v553, %v532
        %v556 = vsel %vm212, %v554, %v534
        %v557 = vsel %vm215, %v555, %v538
        %v558 = vsel %vm215, %v556, %v540
        %v559 = vsel %vm218, %v557, %v544
        %v560 = vsel %vm218, %v558, %v546
        %s561 = scalar_lea.vmem %s148, 80 [#allocation5]
        %562 = vst.msk [vmem:[%s561] sm:$0xff] %vm221, %v559
        %563 = vst.msk [vmem:[%s561 + $0x8] sm:$0xff] %vm221, %v560
        %s564 = sadd.s32 %s150, 6
        %p565 = scmp.lt.s32.totalorder %s564, 6
        %s566 = scalar_select %p565, %s564, 6
        %s567 = smul.u32 %s566, 2
        %s568 = scalar_lea.vmem %s130, %s567 [#allocation2]
        %v569 = vld [vmem:[%s568] sm:$0xf]
        %v570 = vld [vmem:[%s568 + $0x10] sm:$0xf]
        %v571 = vld [vmem:[%s568 + $0x20] sm:$0xf]
        %v572 = vld [vmem:[%s568 + $0x30] sm:$0xf]
        %v577 = vcombine.low %v569, %v570
        %v578 = vcombine.low %v571, %v572
        %581 = vrot.lane.b32.xlu0 %v577, 2
        %v582 = vpop.permute.xlu0 %581
        %583 = vrot.lane.b32.xlu0 %v578, 2
        %v584 = vpop.permute.xlu0 %583
        %587 = vrot.lane.b32.xlu0 %v577, 4
        %v588 = vpop.permute.xlu0 %587
        %589 = vrot.lane.b32.xlu0 %v578, 4
        %v590 = vpop.permute.xlu0 %589
        %593 = vrot.lane.b32.xlu0 %v577, 6
        %v594 = vpop.permute.xlu0 %593
        %595 = vrot.lane.b32.xlu0 %v578, 6
        %v596 = vpop.permute.xlu0 %595
        %599 = vrot.lane.b32.xlu0 %v577, 8
        %v600 = vpop.permute.xlu0 %599
        %601 = vrot.lane.b32.xlu0 %v578, 8
        %v602 = vpop.permute.xlu0 %601
        %605 = vrot.lane.b32.xlu0 %v577, 10
        %v606 = vpop.permute.xlu0 %605
        %607 = vrot.lane.b32.xlu0 %v578, 10
        %v608 = vpop.permute.xlu0 %607
        %611 = vrot.lane.b32.xlu0 %v577, 12
        %v612 = vpop.permute.xlu0 %611
        %613 = vrot.lane.b32.xlu0 %v578, 12
        %v614 = vpop.permute.xlu0 %613
        %v617 = vsel %vm203, %v577, %v582
        %v618 = vsel %vm203, %v578, %v584
        %v619 = vsel %vm206, %v617, %v588
        %v620 = vsel %vm206, %v618, %v590
        %v621 = vsel %vm209, %v619, %v594
        %v622 = vsel %vm209, %v620, %v596
        %v623 = vsel %vm212, %v621, %v600
        %v624 = vsel %vm212, %v622, %v602
        %v625 = vsel %vm215, %v623, %v606
        %v626 = vsel %vm215, %v624, %v608
        %v627 = vsel %vm218, %v625, %v612
        %v628 = vsel %vm218, %v626, %v614
        %s629 = scalar_lea.vmem %s148, 96 [#allocation5]
        %630 = vst.msk [vmem:[%s629] sm:$0xff] %vm221, %v627
        %631 = vst.msk [vmem:[%s629 + $0x8] sm:$0xff] %vm221, %v628
        %s632 = sand.u32 %s66, 1
        %s633 = scalar_lea.sflag [#allocation4], %s632
        %s634 = sand.u32 %s66, 1
        %s635 = smul.addr %s634, 112
        %s636 = scalar_lea.vmem [#allocation5], %s635
        // Predicated region
        $region29: #{tpu_custom_call.1} parent=23 // pred_check
          %p637 = pneg %p76
        $region30: #{tpu_custom_call.1} parent=23 // pred_check_branch
          %639 = sbr.rel (%p637) target = $region32
        $region31: #{tpu_custom_call.1} parent=23 // pred_region
          %s640 = smul.u32 7, %s23
          %s642 = ssub.s32 1792, 1792
          %643 = vsyncadd %s633, %s642
          %s644 = smul.addr %s640, 2
          %s645 = smul.addr %s22, 14
          %s646 = sadd.s32 %s644, %s645
          %s647 = smul.addr %s646, 128
          %s648 = scalar_lea.hbm %s1, %s647
          %s649 = sshll.u32 %s636, 4
          %s650 = int_to_ptr.vmem [resolvable:$true] %s649
          %655 = dma.vmem_to_hbm [thread:$0]  %s650, 1792, %s648, %s633, 128, 128, 8
        $region32: #{tpu_custom_call.1} parent=23 // pred_fallthru
          _
      $region24: #{tpu_custom_call.1} parent=5 // pred_fallthru
        _
      %p656 = scmp.le.s32.totalorder 2, %s13
      // Predicated region
      $region33: #{tpu_custom_call.1} parent=5 // pred_check
        %p657 = pneg %p656
      $region34: #{tpu_custom_call.1} parent=5 // pred_check_branch
        %659 = sbr.rel (%p657) target = $region36
      $region35: #{tpu_custom_call.1} parent=5 // pred_region
        %s660 = ssub.s32 %s13, 2
        // Predicated region
        $region37: #{tpu_custom_call.1} parent=35 // pred_check
          %p661 = pneg %p82
        $region38: #{tpu_custom_call.1} parent=35 // pred_check_branch
          %663 = sbr.rel (%p661) target = $region40
        $region39: #{tpu_custom_call.1} parent=35 // pred_region
          %s664 = sand.u32 %s67, 1
          %s665 = scalar_lea.sflag [#allocation4], %s664
          %s666 = sand.u32 %s67, 1
          %s667 = smul.addr %s666, 112
          %s668 = scalar_lea.vmem [#allocation5], %s667
          %669 = dma.done %s665, 1792
        $region40: #{tpu_custom_call.1} parent=35 // pred_fallthru
          _
      $region36: #{tpu_custom_call.1} parent=5 // pred_fallthru
        _
    $region6: #{tpu_custom_call.1} parent=1 // loop_footer
      %s17 = sadd.s32 1, %s13
    $region7: #{tpu_custom_call.1} parent=1 // loop_footer_branch
      %12 = sbr.rel target = $region3
    $region8: #{tpu_custom_call.1} parent=1 // loop_exit
      _
    %670 = vsyncpa [#allocation3], 1
    %s671 = scalar_lea.sflag [#allocation3], 1
    %672 = vsyncpa %s671, 1
    %673 = vsyncpa [#allocation4], 1
    %s674 = scalar_lea.sflag [#allocation4], 1
    %675 = vsyncpa %s674, 1

</llo_original>
